<compile_context>
chip_gen: v7x
topology: tpu7x:2x2x1
jax: 0.10.0
libtpu: 0.0.40
codegen_flags: <defaults>
</compile_context>

<pallas_src>
import functools

import jax
import jax.numpy as jnp
from jax.experimental import pallas as pl
from jax.experimental.pallas import tpu as pltpu

EPS = 1e-5
LANE = 128
SUB = 8
VMEM_LIMIT = 32 * 1024 * 1024  # explicit; tiny blocks, safe on v5e/v6e/v7x


def _round_up(x, m):
    return (x + m - 1) // m * m


def _pick_row_tile(m, target=256):
    """Largest row tile <= target (multiple of 8) dividing m, else m."""
    if m <= target:
        return m
    for t in range(target, SUB - 1, -SUB):
        if m % t == 0:
            return t
    return m


# ---------------------------------------------------------------------------
# Kernel A: 3x3 conv as a lane-dense im2col matmul, fused with per-tile
# partial BatchNorm statistics (sum / sum-of-squares).  Fully "parallel" grid.
# ---------------------------------------------------------------------------
def conv_stats_kernel(p_ref, w_ref, y_ref, stat_ref):
    # p_ref: (TM, Kp)  w_ref: (Kp, Cp)  y_ref: (TM, Cp)  stat_ref: (1, 8, Cp)
    y = jnp.dot(p_ref[...], w_ref[...], preferred_element_type=jnp.float32)
    y_ref[...] = y
    s = jnp.sum(y, axis=0, keepdims=True)           # (1, Cp) partial sum
    ss = jnp.sum(y * y, axis=0, keepdims=True)      # (1, Cp) partial sum-sq
    pad = jnp.zeros((SUB - 2,) + s.shape[1:], jnp.float32)
    stat_ref[...] = jnp.concatenate([s, ss, pad], axis=0)[None]


def conv3x3_with_stats(patches, w_packed, *, tm):
    M, Kp = patches.shape
    Cp = w_packed.shape[1]
    grid_m = M // tm
    return pl.pallas_call(
        conv_stats_kernel,
        out_shape=(jax.ShapeDtypeStruct((M, Cp), jnp.float32),        # conv out
                   jax.ShapeDtypeStruct((grid_m, SUB, Cp), jnp.float32)),  # stats
        grid=(grid_m,),
        in_specs=[
            pl.BlockSpec((tm, Kp), lambda i: (i, 0)),
            pl.BlockSpec((Kp, Cp), lambda i: (0, 0)),
        ],
        out_specs=(pl.BlockSpec((tm, Cp), lambda i: (i, 0)),
                   pl.BlockSpec((1, SUB, Cp), lambda i: (i, 0, 0))),
        compiler_params=pltpu.CompilerParams(
            dimension_semantics=("parallel",),
            vmem_limit_bytes=VMEM_LIMIT),
    )(patches, w_packed)


# ---------------------------------------------------------------------------
# Kernel B: normalize with precomputed (mean, inv_std) + gamma/beta affine
# + optional residual add + ReLU.  Tiled over M, fully parallel.
# ---------------------------------------------------------------------------
def bn_affine_relu_kernel(y_ref, st_ref, *rest, add_residual):
    if add_residual:
        res_ref, out_ref, bn_ref = rest
    else:
        out_ref, bn_ref = rest

    y = y_ref[...]                                   # (TM, Cp) f32
    mean = st_ref[0:1, :]
    inv_std = st_ref[1:2, :]
    gamma = st_ref[2:3, :]
    beta = st_ref[3:4, :]

    bn = (y - mean) * inv_std
    bn_ref[...] = bn

    out = gamma * bn + beta
    if add_residual:
        out = out + res_ref[...]
    out_ref[...] = jnp.maximum(out, 0.0)


def bn_affine_relu(y, stats_packed, residual=None, *, tm):
    M, Cp = y.shape
    grid_m = M // tm
    add_residual = residual is not None
    kernel = functools.partial(bn_affine_relu_kernel, add_residual=add_residual)

    in_specs = [
        pl.BlockSpec((tm, Cp), lambda i: (i, 0)),    # conv output tile
        pl.BlockSpec((4, Cp), lambda i: (0, 0)),     # [mean; inv_std; gamma; beta]
    ]
    args = [y, stats_packed]
    if add_residual:
        in_specs.append(pl.BlockSpec((tm, Cp), lambda i: (i, 0)))
        args.append(residual)

    out, bn = pl.pallas_call(
        kernel,
        out_shape=(jax.ShapeDtypeStruct((M, Cp), jnp.float32),
                   jax.ShapeDtypeStruct((M, Cp), jnp.float32)),
        grid=(grid_m,),
        in_specs=in_specs,
        out_specs=(pl.BlockSpec((tm, Cp), lambda i: (i, 0)),
                   pl.BlockSpec((tm, Cp), lambda i: (i, 0))),
        compiler_params=pltpu.CompilerParams(
            dimension_semantics=("parallel",),
            vmem_limit_bytes=VMEM_LIMIT),
    )(*args)
    return out, bn


# ---------------------------------------------------------------------------
# Wrapper-side layout plumbing (XLA glue: pad/shift/concat/tiny-reduce fuse).
# ---------------------------------------------------------------------------
def _im2col3x3(x_nhwc, k_pad):
    """(N,H,W,Cin) -> (N*H*W, k_pad) patches; K = 9*Cin, zero-padded to k_pad."""
    N, H, W, C = x_nhwc.shape
    xp = jnp.pad(x_nhwc, ((0, 0), (1, 1), (1, 1), (0, 0)))
    taps = [xp[:, dy:dy + H, dx:dx + W, :]
            for dy in range(3) for dx in range(3)]
    patches = jnp.concatenate(taps, axis=-1).reshape(N * H * W, 9 * C)
    return jnp.pad(patches, ((0, 0), (0, k_pad - 9 * C)))


def _pack_weight(w_hwio, k_pad, c_pad):
    """(3,3,Cin,Cout) -> (k_pad, c_pad); tap order matches _im2col3x3."""
    kh, kw, cin, cout = w_hwio.shape
    w2d = w_hwio.reshape(kh * kw * cin, cout)
    return jnp.pad(w2d, ((0, k_pad - kh * kw * cin), (0, c_pad - cout)))


def _finalize_stats(stats, gamma, beta, c_pad, m):
    """(grid_m, 8, Cp) partial stats -> (4, Cp) [mean; inv_std; gamma; beta]."""
    s = jnp.sum(stats[:, 0, :], axis=0)              # (Cp,)
    ss = jnp.sum(stats[:, 1, :], axis=0)             # (Cp,)
    mean = s / m
    var = ss / m - mean * mean                       # biased (training) var
    inv_std = jax.lax.rsqrt(var + EPS)
    g = jnp.pad(gamma.astype(jnp.float32), (0, c_pad - gamma.shape[0]))
    b = jnp.pad(beta.astype(jnp.float32), (0, c_pad - beta.shape[0]))
    return jnp.stack([mean, inv_std, g, b], axis=0)  # (4, Cp)


# ---------------------------------------------------------------------------
# BasicBlock forward (NCHW boundary, lane-dense (M, Cpad) internally).
# ---------------------------------------------------------------------------
def basic_block_forward(x_nchw, params, *, compute_dtype=jnp.float32):
    # compute_dtype=jnp.bfloat16 is recommended on v6e/v7x (f32 accumulation
    # is kept via preferred_element_type); default f32 for exact parity here.
    N, C, H, W = x_nchw.shape
    Cout = params["w1"].shape[-1]
    assert params["w1"].shape == (3, 3, C, Cout) and C == Cout, \
        "stride=1 / no-downsample BasicBlock expects inplanes == planes"

    M = N * H * W
    c_pad = _round_up(Cout, LANE)
    k_pad = _round_up(9 * C, LANE)
    tm = _pick_row_tile(M)

    x_nhwc = jnp.transpose(x_nchw, (0, 2, 3, 1)).astype(jnp.float32)

    w1p = _pack_weight(params["w1"], k_pad, c_pad).astype(compute_dtype)
    w2p = _pack_weight(params["w2"], k_pad, c_pad).astype(compute_dtype)

    # residual in lane-dense (M, Cpad) layout (padded channels are zero)
    res = jnp.pad(x_nhwc.reshape(M, C), ((0, 0), (0, c_pad - C)))

    # conv1 (+ partial BN1 stats), finalize stats, normalize/affine/relu
    p1 = _im2col3x3(x_nhwc, k_pad).astype(compute_dtype)
    y1, st1 = conv3x3_with_stats(p1, w1p, tm=tm)
    stats1 = _finalize_stats(st1, params["gamma1"], params["beta1"], c_pad, M)
    o1, bn1 = bn_affine_relu(y1, stats1, tm=tm)

    # conv2 (+ partial BN2 stats), finalize, normalize/affine/residual/relu
    o1_nhwc = o1[:, :C].reshape(N, H, W, C)
    p2 = _im2col3x3(o1_nhwc, k_pad).astype(compute_dtype)
    y2, st2 = conv3x3_with_stats(p2, w2p, tm=tm)
    stats2 = _finalize_stats(st2, params["gamma2"], params["beta2"], c_pad, M)
    o2, bn2 = bn_affine_relu(y2, stats2, residual=res, tm=tm)

    def unpack(t):  # (M, Cpad) -> NCHW, drop channel padding
        return jnp.transpose(t[:, :Cout].reshape(N, H, W, Cout), (0, 3, 1, 2))

    return unpack(o2), [unpack(bn1), unpack(bn2)]


# ---------------------------------------------------------------------------
# Pure-JAX reference for the correctness check.
# ---------------------------------------------------------------------------
def reference_forward(x_nchw, params):
    def conv(x, w_hwio):  # x NCHW, w (3,3,Cin,Cout)
        w_oihw = jnp.transpose(w_hwio, (3, 2, 0, 1))
        return jax.lax.conv_general_dilated(
            x, w_oihw, window_strides=(1, 1), padding=((1, 1), (1, 1)),
            dimension_numbers=("NCHW", "OIHW", "NCHW"))

    def bn(x):  # training-mode batch stats, affine handled outside
        mean = jnp.mean(x, axis=(0, 2, 3), keepdims=True)
        var = jnp.mean((x - mean) ** 2, axis=(0, 2, 3), keepdims=True)
        return (x - mean) / jnp.sqrt(var + EPS)

    cview = lambda v: v[None, :, None, None]
    c1 = conv(x_nchw, params["w1"])
    bn1 = bn(c1)
    o1 = jnp.maximum(cview(params["gamma1"]) * bn1 + cview(params["beta1"]), 0)
    c2 = conv(o1, params["w2"])
    bn2 = bn(c2)
    o2 = cview(params["gamma2"]) * bn2 + cview(params["beta2"]) + x_nchw
    return jnp.maximum(o2, 0.0), [bn1, bn2]


if __name__ == "__main__":
    key = jax.random.PRNGKey(0)
    N, C, H, W = 2, 4, 16, 16          # inplanes = planes = 4, stride = 1
    k_x, k_w1, k_w2, k_g1, k_b1, k_g2, k_b2 = jax.random.split(key, 7)

    x = jax.random.normal(k_x, (N, C, H, W), jnp.float32)

    # conv weights stored as (3, 3, Cin, Cout) = HWIO
    params = {
        "w1": jax.random.normal(k_w1, (3, 3, C, C), jnp.float32) * 0.1,
        "w2": jax.random.normal(k_w2, (3, 3, C, C), jnp.float32) * 0.1,
        "gamma1": 1.0 + 0.1 * jax.random.normal(k_g1, (C,), jnp.float32),
        "beta1": 0.1 * jax.random.normal(k_b1, (C,), jnp.float32),
        "gamma2": 1.0 + 0.1 * jax.random.normal(k_g2, (C,), jnp.float32),
        "beta2": 0.1 * jax.random.normal(k_b2, (C,), jnp.float32),
    }

    out, bn_outs = jax.jit(basic_block_forward)(x, params)
    jax.block_until_ready(out)
    jax.block_until_ready(bn_outs)

    ref_out, ref_bn_outs = reference_forward(x, params)
    assert out.shape == (N, C, H, W)
    assert jnp.allclose(out, ref_out, atol=1e-4, rtol=1e-4)
    assert jnp.allclose(bn_outs[0], ref_bn_outs[0], atol=1e-4, rtol=1e-4)
    assert jnp.allclose(bn_outs[1], ref_bn_outs[1], atol=1e-4, rtol=1e-4)

    print("KERNEL_OK")
</pallas_src>

<mosaic_0001>
module attributes {stable_mosaic.version = 11 : i64} {
  func.func @conv_stats_kernel(%arg0: i32, %arg1: memref<256x128xf32, #tpu.memory_space<vmem>>, %arg2: memref<128x128xf32, #tpu.memory_space<vmem>>, %arg3: memref<256x128xf32, #tpu.memory_space<vmem>>, %arg4: memref<1x8x128xf32, #tpu.memory_space<vmem>>) attributes {dimension_semantics = [#tpu.dimension_semantics<parallel>], iteration_bounds = array<i64: 2>, scalar_prefetch = 0 : i64, scratch_operands = 0 : i64, tpu.core_type = #tpu.core_type<tc>, window_params = [{transform_indices = @transform_0, window_bounds = array<i64: 256, 128>}, {pipeline_mode = #tpu.pipeline_mode<synchronous>, transform_indices = @transform_1, window_bounds = array<i64: 128, 128>}, {transform_indices = @transform_2, window_bounds = array<i64: 256, 128>}, {transform_indices = @transform_3, window_bounds = array<i64: 1, 8, 128>}]} {
    %c0 = arith.constant 0 : index
    %c0_0 = arith.constant 0 : index
    %0 = vector.load %arg1[%c0, %c0_0] : memref<256x128xf32, #tpu.memory_space<vmem>>, vector<256x128xf32>
    %c0_1 = arith.constant 0 : index
    %c0_2 = arith.constant 0 : index
    %1 = vector.load %arg2[%c0_1, %c0_2] : memref<128x128xf32, #tpu.memory_space<vmem>>, vector<128x128xf32>
    %cst = arith.constant dense<0.000000e+00> : vector<256x128xf32>
    %2 = tpu.matmul %0, %1, %cst {dimension_numbers = #tpu.dot_dimension_numbers<[1], [0], [0], [1], [0, 0, 1, 1], [], []>} : vector<256x128xf32>, vector<128x128xf32>, vector<256x128xf32> -> vector<256x128xf32>
    %c0_3 = arith.constant 0 : index
    %c0_4 = arith.constant 0 : index
    %3 = vector.load %arg3[%c0_3, %c0_4] : memref<256x128xf32, #tpu.memory_space<vmem>>, vector<256x128xf32>
    tpu.vector_store %arg3[%c0_3, %c0_4], %2 {strides = array<i32>} : memref<256x128xf32, #tpu.memory_space<vmem>>, vector<256x128xf32>,
    %cst_5 = arith.constant dense<0.000000e+00> : vector<128xf32>
    %4 = vector.multi_reduction <add>, %2, %cst_5 [0] : vector<256x128xf32> to vector<128xf32>
    %5 = vector.shape_cast %4 : vector<128xf32> to vector<1x128xf32>
    %6 = arith.mulf %2, %2 : vector<256x128xf32>
    %cst_6 = arith.constant dense<0.000000e+00> : vector<128xf32>
    %7 = vector.multi_reduction <add>, %6, %cst_6 [0] : vector<256x128xf32> to vector<128xf32>
    %8 = vector.shape_cast %7 : vector<128xf32> to vector<1x128xf32>
    %cst_7 = arith.constant 0.000000e+00 : f32
    %9 = vector.broadcast %cst_7 : f32 to vector<6x128xf32>
    %10 = tpu.concatenate %5, %8, %9 in 0 : vector<1x128xf32>, vector<1x128xf32>, vector<6x128xf32> -> vector<8x128xf32>
    %11 = vector.shape_cast %10 : vector<8x128xf32> to vector<1x8x128xf32>
    %c0_8 = arith.constant 0 : index
    %c0_9 = arith.constant 0 : index
    %c0_10 = arith.constant 0 : index
    %12 = vector.load %arg4[%c0_8, %c0_9, %c0_10] : memref<1x8x128xf32, #tpu.memory_space<vmem>>, vector<1x8x128xf32>
    tpu.vector_store %arg4[%c0_8, %c0_9, %c0_10], %11 {strides = array<i32>} : memref<1x8x128xf32, #tpu.memory_space<vmem>>, vector<1x8x128xf32>,
    return
  }
  func.func @transform_0(%arg0: i32) -> (i32, i32) {
    %c0_i32 = arith.constant 0 : i32
    %c0_i32_0 = arith.constant 0 : i32
    return %arg0, %c0_i32 : i32, i32
  }
  func.func @transform_1(%arg0: i32) -> (i32, i32) {
    %c0_i32 = arith.constant 0 : i32
    %c0_i32_0 = arith.constant 0 : i32
    %c0_i32_1 = arith.constant 0 : i32
    return %c0_i32, %c0_i32_0 : i32, i32
  }
  func.func @transform_2(%arg0: i32) -> (i32, i32) {
    %c0_i32 = arith.constant 0 : i32
    %c0_i32_0 = arith.constant 0 : i32
    return %arg0, %c0_i32 : i32, i32
  }
  func.func @transform_3(%arg0: i32) -> (i32, i32, i32) {
    %c0_i32 = arith.constant 0 : i32
    %c0_i32_0 = arith.constant 0 : i32
    %c0_i32_1 = arith.constant 0 : i32
    return %arg0, %c0_i32, %c0_i32_0 : i32, i32, i32
  }
}

module attributes {stable_mosaic.version = 11 : i64} {
  func.func @bn_affine_relu_kernel(%arg0: i32, %arg1: memref<256x128xf32, #tpu.memory_space<vmem>>, %arg2: memref<4x128xf32, #tpu.memory_space<vmem>>, %arg3: memref<256x128xf32, #tpu.memory_space<vmem>>, %arg4: memref<256x128xf32, #tpu.memory_space<vmem>>) attributes {dimension_semantics = [#tpu.dimension_semantics<parallel>], iteration_bounds = array<i64: 2>, scalar_prefetch = 0 : i64, scratch_operands = 0 : i64, tpu.core_type = #tpu.core_type<tc>, window_params = [{transform_indices = @transform_0, window_bounds = array<i64: 256, 128>}, {pipeline_mode = #tpu.pipeline_mode<synchronous>, transform_indices = @transform_1, window_bounds = array<i64: 4, 128>}, {transform_indices = @transform_2, window_bounds = array<i64: 256, 128>}, {transform_indices = @transform_3, window_bounds = array<i64: 256, 128>}]} {
    %c0 = arith.constant 0 : index
    %c0_0 = arith.constant 0 : index
    %0 = vector.load %arg1[%c0, %c0_0] : memref<256x128xf32, #tpu.memory_space<vmem>>, vector<256x128xf32>
    %c0_1 = arith.constant 0 : index
    %c0_2 = arith.constant 0 : index
    %1 = vector.load %arg2[%c0_1, %c0_2] : memref<4x128xf32, #tpu.memory_space<vmem>>, vector<1x128xf32>
    %c1 = arith.constant 1 : index
    %c0_3 = arith.constant 0 : index
    %2 = vector.load %arg2[%c1, %c0_3] : memref<4x128xf32, #tpu.memory_space<vmem>>, vector<1x128xf32>
    %c2 = arith.constant 2 : index
    %c0_4 = arith.constant 0 : index
    %3 = vector.load %arg2[%c2, %c0_4] : memref<4x128xf32, #tpu.memory_space<vmem>>, vector<1x128xf32>
    %c3 = arith.constant 3 : index
    %c0_5 = arith.constant 0 : index
    %4 = vector.load %arg2[%c3, %c0_5] : memref<4x128xf32, #tpu.memory_space<vmem>>, vector<1x128xf32>
    %5 = vector.broadcast %1 : vector<1x128xf32> to vector<256x128xf32>
    %6 = arith.subf %0, %5 : vector<256x128xf32>
    %7 = vector.broadcast %2 : vector<1x128xf32> to vector<256x128xf32>
    %8 = arith.mulf %6, %7 : vector<256x128xf32>
    %c0_6 = arith.constant 0 : index
    %c0_7 = arith.constant 0 : index
    %9 = vector.load %arg4[%c0_6, %c0_7] : memref<256x128xf32, #tpu.memory_space<vmem>>, vector<256x128xf32>
    tpu.vector_store %arg4[%c0_6, %c0_7], %8 {strides = array<i32>} : memref<256x128xf32, #tpu.memory_space<vmem>>, vector<256x128xf32>,
    %10 = vector.broadcast %3 : vector<1x128xf32> to vector<256x128xf32>
    %11 = arith.mulf %10, %8 : vector<256x128xf32>
    %12 = vector.broadcast %4 : vector<1x128xf32> to vector<256x128xf32>
    %13 = arith.addf %11, %12 : vector<256x128xf32>
    %cst = arith.constant 0.000000e+00 : f32
    %14 = vector.broadcast %cst : f32 to vector<256x128xf32>
    %15 = arith.maximumf %13, %14 : vector<256x128xf32>
    %c0_8 = arith.constant 0 : index
    %c0_9 = arith.constant 0 : index
    %16 = vector.load %arg3[%c0_8, %c0_9] : memref<256x128xf32, #tpu.memory_space<vmem>>, vector<256x128xf32>
    tpu.vector_store %arg3[%c0_8, %c0_9], %15 {strides = array<i32>} : memref<256x128xf32, #tpu.memory_space<vmem>>, vector<256x128xf32>,
    return
  }
  func.func @transform_0(%arg0: i32) -> (i32, i32) {
    %c0_i32 = arith.constant 0 : i32
    %c0_i32_0 = arith.constant 0 : i32
    return %arg0, %c0_i32 : i32, i32
  }
  func.func @transform_1(%arg0: i32) -> (i32, i32) {
    %c0_i32 = arith.constant 0 : i32
    %c0_i32_0 = arith.constant 0 : i32
    %c0_i32_1 = arith.constant 0 : i32
    return %c0_i32, %c0_i32_0 : i32, i32
  }
  func.func @transform_2(%arg0: i32) -> (i32, i32) {
    %c0_i32 = arith.constant 0 : i32
    %c0_i32_0 = arith.constant 0 : i32
    return %arg0, %c0_i32 : i32, i32
  }
  func.func @transform_3(%arg0: i32) -> (i32, i32) {
    %c0_i32 = arith.constant 0 : i32
    %c0_i32_0 = arith.constant 0 : i32
    return %arg0, %c0_i32 : i32, i32
  }
}

module attributes {stable_mosaic.version = 11 : i64} {
  func.func @bn_affine_relu_kernel(%arg0: i32, %arg1: memref<256x128xf32, #tpu.memory_space<vmem>>, %arg2: memref<4x128xf32, #tpu.memory_space<vmem>>, %arg3: memref<256x128xf32, #tpu.memory_space<vmem>>, %arg4: memref<256x128xf32, #tpu.memory_space<vmem>>, %arg5: memref<256x128xf32, #tpu.memory_space<vmem>>) attributes {dimension_semantics = [#tpu.dimension_semantics<parallel>], iteration_bounds = array<i64: 2>, scalar_prefetch = 0 : i64, scratch_operands = 0 : i64, tpu.core_type = #tpu.core_type<tc>, window_params = [{transform_indices = @transform_0, window_bounds = array<i64: 256, 128>}, {pipeline_mode = #tpu.pipeline_mode<synchronous>, transform_indices = @transform_1, window_bounds = array<i64: 4, 128>}, {transform_indices = @transform_2, window_bounds = array<i64: 256, 128>}, {transform_indices = @transform_3, window_bounds = array<i64: 256, 128>}, {transform_indices = @transform_4, window_bounds = array<i64: 256, 128>}]} {
    %c0 = arith.constant 0 : index
    %c0_0 = arith.constant 0 : index
    %0 = vector.load %arg1[%c0, %c0_0] : memref<256x128xf32, #tpu.memory_space<vmem>>, vector<256x128xf32>
    %c0_1 = arith.constant 0 : index
    %c0_2 = arith.constant 0 : index
    %1 = vector.load %arg2[%c0_1, %c0_2] : memref<4x128xf32, #tpu.memory_space<vmem>>, vector<1x128xf32>
    %c1 = arith.constant 1 : index
    %c0_3 = arith.constant 0 : index
    %2 = vector.load %arg2[%c1, %c0_3] : memref<4x128xf32, #tpu.memory_space<vmem>>, vector<1x128xf32>
    %c2 = arith.constant 2 : index
    %c0_4 = arith.constant 0 : index
    %3 = vector.load %arg2[%c2, %c0_4] : memref<4x128xf32, #tpu.memory_space<vmem>>, vector<1x128xf32>
    %c3 = arith.constant 3 : index
    %c0_5 = arith.constant 0 : index
    %4 = vector.load %arg2[%c3, %c0_5] : memref<4x128xf32, #tpu.memory_space<vmem>>, vector<1x128xf32>
    %5 = vector.broadcast %1 : vector<1x128xf32> to vector<256x128xf32>
    %6 = arith.subf %0, %5 : vector<256x128xf32>
    %7 = vector.broadcast %2 : vector<1x128xf32> to vector<256x128xf32>
    %8 = arith.mulf %6, %7 : vector<256x128xf32>
    %c0_6 = arith.constant 0 : index
    %c0_7 = arith.constant 0 : index
    %9 = vector.load %arg5[%c0_6, %c0_7] : memref<256x128xf32, #tpu.memory_space<vmem>>, vector<256x128xf32>
    tpu.vector_store %arg5[%c0_6, %c0_7], %8 {strides = array<i32>} : memref<256x128xf32, #tpu.memory_space<vmem>>, vector<256x128xf32>,
    %10 = vector.broadcast %3 : vector<1x128xf32> to vector<256x128xf32>
    %11 = arith.mulf %10, %8 : vector<256x128xf32>
    %12 = vector.broadcast %4 : vector<1x128xf32> to vector<256x128xf32>
    %13 = arith.addf %11, %12 : vector<256x128xf32>
    %c0_8 = arith.constant 0 : index
    %c0_9 = arith.constant 0 : index
    %14 = vector.load %arg3[%c0_8, %c0_9] : memref<256x128xf32, #tpu.memory_space<vmem>>, vector<256x128xf32>
    %15 = arith.addf %13, %14 : vector<256x128xf32>
    %cst = arith.constant 0.000000e+00 : f32
    %16 = vector.broadcast %cst : f32 to vector<256x128xf32>
    %17 = arith.maximumf %15, %16 : vector<256x128xf32>
    %c0_10 = arith.constant 0 : index
    %c0_11 = arith.constant 0 : index
    %18 = vector.load %arg4[%c0_10, %c0_11] : memref<256x128xf32, #tpu.memory_space<vmem>>, vector<256x128xf32>
    tpu.vector_store %arg4[%c0_10, %c0_11], %17 {strides = array<i32>} : memref<256x128xf32, #tpu.memory_space<vmem>>, vector<256x128xf32>,
    return
  }
  func.func @transform_0(%arg0: i32) -> (i32, i32) {
    %c0_i32 = arith.constant 0 : i32
    %c0_i32_0 = arith.constant 0 : i32
    return %arg0, %c0_i32 : i32, i32
  }
  func.func @transform_1(%arg0: i32) -> (i32, i32) {
    %c0_i32 = arith.constant 0 : i32
    %c0_i32_0 = arith.constant 0 : i32
    %c0_i32_1 = arith.constant 0 : i32
    return %c0_i32, %c0_i32_0 : i32, i32
  }
  func.func @transform_2(%arg0: i32) -> (i32, i32) {
    %c0_i32 = arith.constant 0 : i32
    %c0_i32_0 = arith.constant 0 : i32
    return %arg0, %c0_i32 : i32, i32
  }
  func.func @transform_3(%arg0: i32) -> (i32, i32) {
    %c0_i32 = arith.constant 0 : i32
    %c0_i32_0 = arith.constant 0 : i32
    return %arg0, %c0_i32 : i32, i32
  }
  func.func @transform_4(%arg0: i32) -> (i32, i32) {
    %c0_i32 = arith.constant 0 : i32
    %c0_i32_0 = arith.constant 0 : i32
    return %arg0, %c0_i32 : i32, i32
  }
}

</mosaic_0001>

<llo_original>
// kernel: basic_block_forward.5
$region0: #{basic_block_forward.5}
  #allocation0 [shape = 'u32[]', space=smem, size = 0x4, offset = 0x4, fixed_abs, tag = 'smem constant byte address 0x4 - core index']
  #allocation1 [shape = 'u32[144,128]{1,0:T(1,128)}', space=vmem, size = 0x12000, scoped, tag = 'internal scratch']
  %s0 = inlined_call_operand.vmem [shape: f32[512,128], index: 0, kind: input, shape index: {}]
  %s1 = inlined_call_operand.vmem [shape: f32[4,128], index: 1, kind: input, shape index: {}]
  %s2 = inlined_call_operand.vmem [shape: f32[512,128], index: 2, kind: output, shape index: {0}]
  %s3 = inlined_call_operand.vmem [shape: f32[512,128], index: 3, kind: output, shape index: {1}]
  %4 = xla_tuple %s2, %s3
  %s5 = sld [smem:[#allocation0]]
  $region49: #{basic_block_forward.5} parent=0
    _
  %s7 = ssub.s32 1, %s5
  %s8 = scalar_select 0, %s7, %s5
  loop: start=0, step=1, limit=4
  $region2: #{basic_block_forward.5} parent=0 // loop_pre_header
    _
  $region3: #{basic_block_forward.5} parent=0 // loop_header
    %s10 = sphi 0, %s14
    %p11 = scmp.ge.s32.totalorder %s10, 4
    %s20 = sphi 0, %s22
    %s23 = sphi 0, %s20
    %s24 = sphi 0, %s23
    %s40 = sphi 0, %s24
    %s44 = sphi 0, %s44
    %s46 = sphi 0, %s44
    %s47 = sphi 0, %s46
    %s61 = sphi 0, %s47
    %s67 = sphi 0, %s69
    %s70 = sphi 0, %s67
    %s71 = sphi 0, %s70
    %s87 = sphi 0, %s71
    %s93 = sphi 0, %s95
    %s96 = sphi 0, %s93
    %s97 = sphi 0, %s96
    %s113 = sphi 0, %s97
  $region4: #{basic_block_forward.5} parent=0 // loop_header_branch
    %13 = sbr.rel (%p11) target = $region8
  $region5: #{basic_block_forward.5} parent=0 // loop_body
    %s15 = ssub.s32 %s10, 1
    %s16 = ssub.s32 %s10, 2
    %s17 = sadd.s32 %s10, 1
    %s18 = ssub.s32 %s10, %s17
    %p19 = scmp.eq.s32.totalorder %s18, 0
    %s21 = sadd.s32 %s20, 1
    %s22 = scalar_select %p19, %s20, %s21
    %p25 = pneg %p19
    %p26 = scmp.eq.s32.totalorder %s10, 1
    %p27 = por %p25, %p26
    %p28 = scmp.ne.s32.totalorder %s20, %s23
    %p29 = scmp.eq.s32.totalorder %s10, 0
    %p30 = por %p28, %p29
    %p31 = scmp.ne.s32.totalorder %s20, %s23
    %p32 = scmp.eq.s32.totalorder %s15, 1
    %p33 = por %p31, %p32
    %p34 = scmp.ne.s32.totalorder %s23, %s24
    %p35 = scmp.eq.s32.totalorder %s15, 0
    %p36 = por %p34, %p35
    %p37 = scmp.ne.s32.totalorder %s23, %s24
    %p38 = scmp.eq.s32.totalorder %s16, 1
    %p39 = por %p37, %p38
    %p41 = scmp.ne.s32.totalorder %s24, %s40
    %p42 = scmp.eq.s32.totalorder %s16, 0
    %p43 = por %p41, %p42
    %s45 = sadd.s32 %s44, 1
    %p48 = scmp.eq.s32.totalorder %s10, 1
    %p49 = scmp.ne.s32.totalorder %s44, %s46
    %p50 = scmp.eq.s32.totalorder %s10, 0
    %p51 = por %p49, %p50
    %p52 = scmp.ne.s32.totalorder %s44, %s46
    %p53 = scmp.eq.s32.totalorder %s15, 1
    %p54 = por %p52, %p53
    %p55 = scmp.ne.s32.totalorder %s46, %s47
    %p56 = scmp.eq.s32.totalorder %s15, 0
    %p57 = por %p55, %p56
    %p58 = scmp.ne.s32.totalorder %s46, %s47
    %p59 = scmp.eq.s32.totalorder %s16, 1
    %p60 = por %p58, %p59
    %p62 = scmp.ne.s32.totalorder %s47, %s61
    %p63 = scmp.eq.s32.totalorder %s16, 0
    %p64 = por %p62, %p63
    %s65 = ssub.s32 %s10, %s17
    %p66 = scmp.eq.s32.totalorder %s65, 0
    %s68 = sadd.s32 %s67, 1
    %s69 = scalar_select %p66, %s67, %s68
    %p72 = pneg %p66
    %p73 = scmp.eq.s32.totalorder %s10, 1
    %p74 = por %p72, %p73
    %p75 = scmp.ne.s32.totalorder %s67, %s70
    %p76 = scmp.eq.s32.totalorder %s10, 0
    %p77 = por %p75, %p76
    %p78 = scmp.ne.s32.totalorder %s67, %s70
    %p79 = scmp.eq.s32.totalorder %s15, 1
    %p80 = por %p78, %p79
    %p81 = scmp.ne.s32.totalorder %s70, %s71
    %p82 = scmp.eq.s32.totalorder %s15, 0
    %p83 = por %p81, %p82
    %p84 = scmp.ne.s32.totalorder %s70, %s71
    %p85 = scmp.eq.s32.totalorder %s16, 1
    %p86 = por %p84, %p85
    %p88 = scmp.ne.s32.totalorder %s71, %s87
    %p89 = scmp.eq.s32.totalorder %s16, 0
    %p90 = por %p88, %p89
    %s91 = ssub.s32 %s10, %s17
    %p92 = scmp.eq.s32.totalorder %s91, 0
    %s94 = sadd.s32 %s93, 1
    %s95 = scalar_select %p92, %s93, %s94
    %p98 = pneg %p92
    %p99 = scmp.eq.s32.totalorder %s10, 1
    %p100 = por %p98, %p99
    %p101 = scmp.ne.s32.totalorder %s93, %s96
    %p102 = scmp.eq.s32.totalorder %s10, 0
    %p103 = por %p101, %p102
    %p104 = scmp.ne.s32.totalorder %s93, %s96
    %p105 = scmp.eq.s32.totalorder %s15, 1
    %p106 = por %p104, %p105
    %p107 = scmp.ne.s32.totalorder %s96, %s97
    %p108 = scmp.eq.s32.totalorder %s15, 0
    %p109 = por %p107, %p108
    %p110 = scmp.ne.s32.totalorder %s96, %s97
    %p111 = scmp.eq.s32.totalorder %s16, 1
    %p112 = por %p110, %p111
    %p114 = scmp.ne.s32.totalorder %s97, %s113
    %p115 = scmp.eq.s32.totalorder %s16, 0
    %p116 = por %p114, %p115
    %p117 = scmp.le.s32.totalorder 1, %s10
    %p118 = scmp.lt.s32.totalorder %s10, 3
    %p119 = pnand %p117, %p118
    %p120 = pneg %p119
    // Predicated region
    $region9: #{basic_block_forward.5} parent=5 // pred_check
      _
    $region10: #{basic_block_forward.5} parent=5 // pred_check_branch
      %122 = sbr.rel (%p119) target = $region12
    $region11: #{basic_block_forward.5} parent=5 // pred_region
      %s123 = ssub.s32 %s10, 1
      // Predicated region
      $region13: #{basic_block_forward.5} parent=11 // pred_check
        %p124 = pneg %p57
      $region14: #{basic_block_forward.5} parent=11 // pred_check_branch
        %126 = sbr.rel (%p124) target = $region16
      $region15: #{basic_block_forward.5} parent=11 // pred_region
        _
      $region16: #{basic_block_forward.5} parent=11 // pred_fallthru
        _
    $region12: #{basic_block_forward.5} parent=5 // pred_fallthru
      _
    %p127 = scmp.lt.s32.totalorder %s10, 2
    // Predicated region
    $region17: #{basic_block_forward.5} parent=5 // pred_check
      %p128 = pneg %p127
    $region18: #{basic_block_forward.5} parent=5 // pred_check_branch
      %130 = sbr.rel (%p128) target = $region20
    $region19: #{basic_block_forward.5} parent=5 // pred_region
      // Predicated region
      $region21: #{basic_block_forward.5} parent=19 // pred_check
        %p131 = pneg %p30
      $region22: #{basic_block_forward.5} parent=19 // pred_check_branch
        %133 = sbr.rel (%p131) target = $region24
      $region23: #{basic_block_forward.5} parent=19 // pred_region
        %s134 = smul.u32 32, %s10
        %p135 = scmp.lt.s32.totalorder %s134, 63
        %s136 = scalar_select %p135, %s134, 63
        %s137 = smul.addr %s136, 8
        %s138 = scalar_lea.vmem %s0, %s137
        %s139 = smul.u32 32, %s10
      $region24: #{basic_block_forward.5} parent=19 // pred_fallthru
        _
    $region20: #{basic_block_forward.5} parent=5 // pred_fallthru
      _
    %p140 = scmp.le.s32.totalorder 1, %s10
    %p141 = scmp.lt.s32.totalorder %s10, 3
    %p142 = pnand %p140, %p141
    %p143 = pneg %p142
    // Predicated region
    $region25: #{basic_block_forward.5} parent=5 // pred_check
      _
    $region26: #{basic_block_forward.5} parent=5 // pred_check_branch
      %145 = sbr.rel (%p142) target = $region28
    $region27: #{basic_block_forward.5} parent=5 // pred_region
      %s146 = ssub.s32 %s10, 1
      %s147 = smul.u32 32, %s15
      %p148 = scmp.lt.s32.totalorder %s147, 63
      %s149 = scalar_select %p148, %s147, 63
      %s150 = smul.addr %s149, 8
      %s151 = scalar_lea.vmem %s0, %s150
      %p152 = pneg %p36
      %p153 = pneg %p33
      %p154 = pneg %p57
      %p155 = pneg %p54
      %p156 = pneg %p83
      %p157 = pneg %p80
      %s158 = smul.u32 32, %s15
      %p159 = scmp.lt.s32.totalorder %s158, 63
      %s160 = scalar_select %p159, %s158, 63
      %s161 = smul.addr %s160, 8
      %s162 = scalar_lea.vmem %s2, %s161
      %p163 = pneg %p109
      %p164 = pneg %p106
      %s165 = smul.u32 32, %s15
      %p166 = scmp.lt.s32.totalorder %s165, 63
      %s167 = scalar_select %p166, %s165, 63
      %s168 = smul.addr %s167, 8
      %s169 = scalar_lea.vmem %s3, %s168
      %s170 = smul.u32 32, %s15
      %p171 = scmp.lt.s32.totalorder %s170, 63
      %s172 = scalar_select %p171, %s170, 63
      %s173 = smul.addr %s172, 8
      %s174 = scalar_lea.vmem %s0, %s173
      %s175 = smul.u32 32, %s15
      %s176 = smul.u32 32, %s15
      %p177 = scmp.lt.s32.totalorder %s176, 63
      %s178 = scalar_select %p177, %s176, 63
      %s179 = smul.addr %s178, 8
      %s180 = scalar_lea.vmem %s2, %s179
      %s181 = smul.u32 32, %s15
      %s182 = smul.u32 32, %s15
      %p183 = scmp.lt.s32.totalorder %s182, 63
      %s184 = scalar_select %p183, %s182, 63
      %s185 = smul.addr %s184, 8
      %s186 = scalar_lea.vmem %s3, %s185
      %s187 = smul.u32 32, %s15
      %v188 = vld [vmem:[%s174] sm:$0xff]
      %v189 = vld [vmem:[%s174 + $0x8] sm:$0xff]
      %v190 = vld [vmem:[%s174 + $0x10] sm:$0xff]
      %v191 = vld [vmem:[%s174 + $0x18] sm:$0xff]
      %v192 = vld [vmem:[%s174 + $0x20] sm:$0xff]
      %v193 = vld [vmem:[%s174 + $0x28] sm:$0xff]
      %v194 = vld [vmem:[%s174 + $0x30] sm:$0xff]
      %v195 = vld [vmem:[%s174 + $0x38] sm:$0xff]
      %v196 = vld [vmem:[%s174 + $0x40] sm:$0xff]
      %v197 = vld [vmem:[%s174 + $0x48] sm:$0xff]
      %v198 = vld [vmem:[%s174 + $0x50] sm:$0xff]
      %v199 = vld [vmem:[%s174 + $0x58] sm:$0xff]
      %v200 = vld [vmem:[%s174 + $0x60] sm:$0xff]
      %v201 = vld [vmem:[%s174 + $0x68] sm:$0xff]
      %v202 = vld [vmem:[%s174 + $0x70] sm:$0xff]
      %v203 = vld [vmem:[%s174 + $0x78] sm:$0xff]
      %v204 = vld [vmem:[%s174 + $0x80] sm:$0xff]
      %v205 = vld [vmem:[%s174 + $0x88] sm:$0xff]
      %v206 = vld [vmem:[%s174 + $0x90] sm:$0xff]
      %v207 = vld [vmem:[%s174 + $0x98] sm:$0xff]
      %v208 = vld [vmem:[%s174 + $0xa0] sm:$0xff]
      %v209 = vld [vmem:[%s174 + $0xa8] sm:$0xff]
      %v210 = vld [vmem:[%s174 + $0xb0] sm:$0xff]
      %v211 = vld [vmem:[%s174 + $0xb8] sm:$0xff]
      %v212 = vld [vmem:[%s174 + $0xc0] sm:$0xff]
      %v213 = vld [vmem:[%s174 + $0xc8] sm:$0xff]
      %v214 = vld [vmem:[%s174 + $0xd0] sm:$0xff]
      %v215 = vld [vmem:[%s174 + $0xd8] sm:$0xff]
      %v216 = vld [vmem:[%s174 + $0xe0] sm:$0xff]
      %v217 = vld [vmem:[%s174 + $0xe8] sm:$0xff]
      %v218 = vld [vmem:[%s174 + $0xf0] sm:$0xff]
      %v219 = vld [vmem:[%s174 + $0xf8] sm:$0xff]
      %v220 = vld [vmem:[%s1] sm:$0x1]
      %v221 = vld [vmem:[%s1 + $0x1] sm:$0x1]
      %v222 = vld [vmem:[%s1 + $0x2] sm:$0x1]
      %v223 = vld [vmem:[%s1 + $0x3] sm:$0x1]
      %v224 = vlaneseq
      %v225 = vshrl.u32 %v224, 7
      %v226 = vsub.s32 0, %v225
      %v227 = vrot.slane %v220, %v226
      %v228 = vsub.f32 %v188, %v227
      %v229 = vsub.f32 %v189, %v227
      %v230 = vsub.f32 %v190, %v227
      %v231 = vsub.f32 %v191, %v227
      %v232 = vsub.f32 %v192, %v227
      %v233 = vsub.f32 %v193, %v227
      %v234 = vsub.f32 %v194, %v227
      %v235 = vsub.f32 %v195, %v227
      %v236 = vsub.f32 %v196, %v227
      %v237 = vsub.f32 %v197, %v227
      %v238 = vsub.f32 %v198, %v227
      %v239 = vsub.f32 %v199, %v227
      %v240 = vsub.f32 %v200, %v227
      %v241 = vsub.f32 %v201, %v227
      %v242 = vsub.f32 %v202, %v227
      %v243 = vsub.f32 %v203, %v227
      %v244 = vsub.f32 %v204, %v227
      %v245 = vsub.f32 %v205, %v227
      %v246 = vsub.f32 %v206, %v227
      %v247 = vsub.f32 %v207, %v227
      %v248 = vsub.f32 %v208, %v227
      %v249 = vsub.f32 %v209, %v227
      %v250 = vsub.f32 %v210, %v227
      %v251 = vsub.f32 %v211, %v227
      %v252 = vsub.f32 %v212, %v227
      %v253 = vsub.f32 %v213, %v227
      %v254 = vsub.f32 %v214, %v227
      %v255 = vsub.f32 %v215, %v227
      %v256 = vsub.f32 %v216, %v227
      %v257 = vsub.f32 %v217, %v227
      %v258 = vsub.f32 %v218, %v227
      %v259 = vsub.f32 %v219, %v227
      %v260 = vlaneseq
      %v261 = vshrl.u32 %v260, 7
      %v262 = vsub.s32 0, %v261
      %v263 = vrot.slane %v221, %v262
      %v264 = vmul.f32 %v228, %v263
      %v265 = vmul.f32 %v229, %v263
      %v266 = vmul.f32 %v230, %v263
      %v267 = vmul.f32 %v231, %v263
      %v268 = vmul.f32 %v232, %v263
      %v269 = vmul.f32 %v233, %v263
      %v270 = vmul.f32 %v234, %v263
      %v271 = vmul.f32 %v235, %v263
      %v272 = vmul.f32 %v236, %v263
      %v273 = vmul.f32 %v237, %v263
      %v274 = vmul.f32 %v238, %v263
      %v275 = vmul.f32 %v239, %v263
      %v276 = vmul.f32 %v240, %v263
      %v277 = vmul.f32 %v241, %v263
      %v278 = vmul.f32 %v242, %v263
      %v279 = vmul.f32 %v243, %v263
      %v280 = vmul.f32 %v244, %v263
      %v281 = vmul.f32 %v245, %v263
      %v282 = vmul.f32 %v246, %v263
      %v283 = vmul.f32 %v247, %v263
      %v284 = vmul.f32 %v248, %v263
      %v285 = vmul.f32 %v249, %v263
      %v286 = vmul.f32 %v250, %v263
      %v287 = vmul.f32 %v251, %v263
      %v288 = vmul.f32 %v252, %v263
      %v289 = vmul.f32 %v253, %v263
      %v290 = vmul.f32 %v254, %v263
      %v291 = vmul.f32 %v255, %v263
      %v292 = vmul.f32 %v256, %v263
      %v293 = vmul.f32 %v257, %v263
      %v294 = vmul.f32 %v258, %v263
      %v295 = vmul.f32 %v259, %v263
      %296 = vst [vmem:[%s186] sm:$0xff] %v264
      %297 = vst [vmem:[%s186 + $0x8] sm:$0xff] %v265
      %298 = vst [vmem:[%s186 + $0x10] sm:$0xff] %v266
      %299 = vst [vmem:[%s186 + $0x18] sm:$0xff] %v267
      %300 = vst [vmem:[%s186 + $0x20] sm:$0xff] %v268
      %301 = vst [vmem:[%s186 + $0x28] sm:$0xff] %v269
      %302 = vst [vmem:[%s186 + $0x30] sm:$0xff] %v270
      %303 = vst [vmem:[%s186 + $0x38] sm:$0xff] %v271
      %304 = vst [vmem:[%s186 + $0x40] sm:$0xff] %v272
      %305 = vst [vmem:[%s186 + $0x48] sm:$0xff] %v273
      %306 = vst [vmem:[%s186 + $0x50] sm:$0xff] %v274
      %307 = vst [vmem:[%s186 + $0x58] sm:$0xff] %v275
      %308 = vst [vmem:[%s186 + $0x60] sm:$0xff] %v276
      %309 = vst [vmem:[%s186 + $0x68] sm:$0xff] %v277
      %310 = vst [vmem:[%s186 + $0x70] sm:$0xff] %v278
      %311 = vst [vmem:[%s186 + $0x78] sm:$0xff] %v279
      %312 = vst [vmem:[%s186 + $0x80] sm:$0xff] %v280
      %313 = vst [vmem:[%s186 + $0x88] sm:$0xff] %v281
      %314 = vst [vmem:[%s186 + $0x90] sm:$0xff] %v282
      %315 = vst [vmem:[%s186 + $0x98] sm:$0xff] %v283
      %316 = vst [vmem:[%s186 + $0xa0] sm:$0xff] %v284
      %317 = vst [vmem:[%s186 + $0xa8] sm:$0xff] %v285
      %318 = vst [vmem:[%s186 + $0xb0] sm:$0xff] %v286
      %319 = vst [vmem:[%s186 + $0xb8] sm:$0xff] %v287
      %320 = vst [vmem:[%s186 + $0xc0] sm:$0xff] %v288
      %321 = vst [vmem:[%s186 + $0xc8] sm:$0xff] %v289
      %322 = vst [vmem:[%s186 + $0xd0] sm:$0xff] %v290
      %323 = vst [vmem:[%s186 + $0xd8] sm:$0xff] %v291
      %324 = vst [vmem:[%s186 + $0xe0] sm:$0xff] %v292
      %325 = vst [vmem:[%s186 + $0xe8] sm:$0xff] %v293
      %326 = vst [vmem:[%s186 + $0xf0] sm:$0xff] %v294
      %327 = vst [vmem:[%s186 + $0xf8] sm:$0xff] %v295
      %v328 = vlaneseq
      %v329 = vshrl.u32 %v328, 7
      %v330 = vsub.s32 0, %v329
      %v331 = vrot.slane %v222, %v330
      %v332 = vmul.f32 %v331, %v264
      %v333 = vmul.f32 %v331, %v265
      %v334 = vmul.f32 %v331, %v266
      %v335 = vmul.f32 %v331, %v267
      %v336 = vmul.f32 %v331, %v268
      %v337 = vmul.f32 %v331, %v269
      %v338 = vmul.f32 %v331, %v270
      %v339 = vmul.f32 %v331, %v271
      %v340 = vmul.f32 %v331, %v272
      %v341 = vmul.f32 %v331, %v273
      %v342 = vmul.f32 %v331, %v274
      %v343 = vmul.f32 %v331, %v275
      %v344 = vmul.f32 %v331, %v276
      %v345 = vmul.f32 %v331, %v277
      %v346 = vmul.f32 %v331, %v278
      %v347 = vmul.f32 %v331, %v279
      %v348 = vmul.f32 %v331, %v280
      %v349 = vmul.f32 %v331, %v281
      %v350 = vmul.f32 %v331, %v282
      %v351 = vmul.f32 %v331, %v283
      %v352 = vmul.f32 %v331, %v284
      %v353 = vmul.f32 %v331, %v285
      %v354 = vmul.f32 %v331, %v286
      %v355 = vmul.f32 %v331, %v287
      %v356 = vmul.f32 %v331, %v288
      %v357 = vmul.f32 %v331, %v289
      %v358 = vmul.f32 %v331, %v290
      %v359 = vmul.f32 %v331, %v291
      %v360 = vmul.f32 %v331, %v292
      %v361 = vmul.f32 %v331, %v293
      %v362 = vmul.f32 %v331, %v294
      %v363 = vmul.f32 %v331, %v295
      %v364 = vlaneseq
      %v365 = vshrl.u32 %v364, 7
      %v366 = vsub.s32 0, %v365
      %v367 = vrot.slane %v223, %v366
      %v368 = vadd.f32 %v332, %v367
      %v369 = vadd.f32 %v333, %v367
      %v370 = vadd.f32 %v334, %v367
      %v371 = vadd.f32 %v335, %v367
      %v372 = vadd.f32 %v336, %v367
      %v373 = vadd.f32 %v337, %v367
      %v374 = vadd.f32 %v338, %v367
      %v375 = vadd.f32 %v339, %v367
      %v376 = vadd.f32 %v340, %v367
      %v377 = vadd.f32 %v341, %v367
      %v378 = vadd.f32 %v342, %v367
      %v379 = vadd.f32 %v343, %v367
      %v380 = vadd.f32 %v344, %v367
      %v381 = vadd.f32 %v345, %v367
      %v382 = vadd.f32 %v346, %v367
      %v383 = vadd.f32 %v347, %v367
      %v384 = vadd.f32 %v348, %v367
      %v385 = vadd.f32 %v349, %v367
      %v386 = vadd.f32 %v350, %v367
      %v387 = vadd.f32 %v351, %v367
      %v388 = vadd.f32 %v352, %v367
      %v389 = vadd.f32 %v353, %v367
      %v390 = vadd.f32 %v354, %v367
      %v391 = vadd.f32 %v355, %v367
      %v392 = vadd.f32 %v356, %v367
      %v393 = vadd.f32 %v357, %v367
      %v394 = vadd.f32 %v358, %v367
      %v395 = vadd.f32 %v359, %v367
      %v396 = vadd.f32 %v360, %v367
      %v397 = vadd.f32 %v361, %v367
      %v398 = vadd.f32 %v362, %v367
      %v399 = vadd.f32 %v363, %v367
      %v400 = vmax.f32 %v368, 0.0
      %v401 = vmax.f32 %v369, 0.0
      %v402 = vmax.f32 %v370, 0.0
      %v403 = vmax.f32 %v371, 0.0
      %v404 = vmax.f32 %v372, 0.0
      %v405 = vmax.f32 %v373, 0.0
      %v406 = vmax.f32 %v374, 0.0
      %v407 = vmax.f32 %v375, 0.0
      %v408 = vmax.f32 %v376, 0.0
      %v409 = vmax.f32 %v377, 0.0
      %v410 = vmax.f32 %v378, 0.0
      %v411 = vmax.f32 %v379, 0.0
      %v412 = vmax.f32 %v380, 0.0
      %v413 = vmax.f32 %v381, 0.0
      %v414 = vmax.f32 %v382, 0.0
      %v415 = vmax.f32 %v383, 0.0
      %v416 = vmax.f32 %v384, 0.0
      %v417 = vmax.f32 %v385, 0.0
      %v418 = vmax.f32 %v386, 0.0
      %v419 = vmax.f32 %v387, 0.0
      %v420 = vmax.f32 %v388, 0.0
      %v421 = vmax.f32 %v389, 0.0
      %v422 = vmax.f32 %v390, 0.0
      %v423 = vmax.f32 %v391, 0.0
      %v424 = vmax.f32 %v392, 0.0
      %v425 = vmax.f32 %v393, 0.0
      %v426 = vmax.f32 %v394, 0.0
      %v427 = vmax.f32 %v395, 0.0
      %v428 = vmax.f32 %v396, 0.0
      %v429 = vmax.f32 %v397, 0.0
      %v430 = vmax.f32 %v398, 0.0
      %v431 = vmax.f32 %v399, 0.0
      %432 = vst [vmem:[%s180] sm:$0xff] %v400
      %433 = vst [vmem:[%s180 + $0x8] sm:$0xff] %v401
      %434 = vst [vmem:[%s180 + $0x10] sm:$0xff] %v402
      %435 = vst [vmem:[%s180 + $0x18] sm:$0xff] %v403
      %436 = vst [vmem:[%s180 + $0x20] sm:$0xff] %v404
      %437 = vst [vmem:[%s180 + $0x28] sm:$0xff] %v405
      %438 = vst [vmem:[%s180 + $0x30] sm:$0xff] %v406
      %439 = vst [vmem:[%s180 + $0x38] sm:$0xff] %v407
      %440 = vst [vmem:[%s180 + $0x40] sm:$0xff] %v408
      %441 = vst [vmem:[%s180 + $0x48] sm:$0xff] %v409
      %442 = vst [vmem:[%s180 + $0x50] sm:$0xff] %v410
      %443 = vst [vmem:[%s180 + $0x58] sm:$0xff] %v411
      %444 = vst [vmem:[%s180 + $0x60] sm:$0xff] %v412
      %445 = vst [vmem:[%s180 + $0x68] sm:$0xff] %v413
      %446 = vst [vmem:[%s180 + $0x70] sm:$0xff] %v414
      %447 = vst [vmem:[%s180 + $0x78] sm:$0xff] %v415
      %448 = vst [vmem:[%s180 + $0x80] sm:$0xff] %v416
      %449 = vst [vmem:[%s180 + $0x88] sm:$0xff] %v417
      %450 = vst [vmem:[%s180 + $0x90] sm:$0xff] %v418
      %451 = vst [vmem:[%s180 + $0x98] sm:$0xff] %v419
      %452 = vst [vmem:[%s180 + $0xa0] sm:$0xff] %v420
      %453 = vst [vmem:[%s180 + $0xa8] sm:$0xff] %v421
      %454 = vst [vmem:[%s180 + $0xb0] sm:$0xff] %v422
      %455 = vst [vmem:[%s180 + $0xb8] sm:$0xff] %v423
      %456 = vst [vmem:[%s180 + $0xc0] sm:$0xff] %v424
      %457 = vst [vmem:[%s180 + $0xc8] sm:$0xff] %v425
      %458 = vst [vmem:[%s180 + $0xd0] sm:$0xff] %v426
      %459 = vst [vmem:[%s180 + $0xd8] sm:$0xff] %v427
      %460 = vst [vmem:[%s180 + $0xe0] sm:$0xff] %v428
      %461 = vst [vmem:[%s180 + $0xe8] sm:$0xff] %v429
      %462 = vst [vmem:[%s180 + $0xf0] sm:$0xff] %v430
      %463 = vst [vmem:[%s180 + $0xf8] sm:$0xff] %v431
      %s464 = smul.u32 32, %s15
      %p465 = scmp.lt.s32.totalorder %s464, 63
      %s466 = scalar_select %p465, %s464, 63
      %s467 = smul.addr %s466, 8
      %s468 = scalar_lea.vmem %s2, %s467
      %s469 = smul.u32 32, %s15
      %p470 = scmp.lt.s32.totalorder %s469, 63
      %s471 = scalar_select %p470, %s469, 63
      %s472 = smul.addr %s471, 8
      %s473 = scalar_lea.vmem %s3, %s472
      // Predicated region
      $region29: #{basic_block_forward.5} parent=27 // pred_check
        %p474 = pneg %p80
      $region30: #{basic_block_forward.5} parent=27 // pred_check_branch
        %476 = sbr.rel (%p474) target = $region32
      $region31: #{basic_block_forward.5} parent=27 // pred_region
        %s477 = smul.u32 32, %s15
      $region32: #{basic_block_forward.5} parent=27 // pred_fallthru
        _
      // Predicated region
      $region33: #{basic_block_forward.5} parent=27 // pred_check
        %p478 = pneg %p106
      $region34: #{basic_block_forward.5} parent=27 // pred_check_branch
        %480 = sbr.rel (%p478) target = $region36
      $region35: #{basic_block_forward.5} parent=27 // pred_region
        %s481 = smul.u32 32, %s15
      $region36: #{basic_block_forward.5} parent=27 // pred_fallthru
        _
    $region28: #{basic_block_forward.5} parent=5 // pred_fallthru
      _
    %p482 = scmp.le.s32.totalorder 2, %s10
    // Predicated region
    $region37: #{basic_block_forward.5} parent=5 // pred_check
      %p483 = pneg %p482
    $region38: #{basic_block_forward.5} parent=5 // pred_check_branch
      %485 = sbr.rel (%p483) target = $region40
    $region39: #{basic_block_forward.5} parent=5 // pred_region
      %s486 = ssub.s32 %s10, 2
      // Predicated region
      $region41: #{basic_block_forward.5} parent=39 // pred_check
        %p487 = pneg %p86
      $region42: #{basic_block_forward.5} parent=39 // pred_check_branch
        %489 = sbr.rel (%p487) target = $region44
      $region43: #{basic_block_forward.5} parent=39 // pred_region
        %s490 = smul.u32 32, %s16
        %p491 = scmp.lt.s32.totalorder %s490, 63
        %s492 = scalar_select %p491, %s490, 63
        %s493 = smul.addr %s492, 8
        %s494 = scalar_lea.vmem %s2, %s493
      $region44: #{basic_block_forward.5} parent=39 // pred_fallthru
        _
      // Predicated region
      $region45: #{basic_block_forward.5} parent=39 // pred_check
        %p495 = pneg %p112
      $region46: #{basic_block_forward.5} parent=39 // pred_check_branch
        %497 = sbr.rel (%p495) target = $region48
      $region47: #{basic_block_forward.5} parent=39 // pred_region
        %s498 = smul.u32 32, %s16
        %p499 = scmp.lt.s32.totalorder %s498, 63
        %s500 = scalar_select %p499, %s498, 63
        %s501 = smul.addr %s500, 8
        %s502 = scalar_lea.vmem %s3, %s501
      $region48: #{basic_block_forward.5} parent=39 // pred_fallthru
        _
    $region40: #{basic_block_forward.5} parent=5 // pred_fallthru
      _
  $region6: #{basic_block_forward.5} parent=0 // loop_footer
    %s14 = sadd.s32 1, %s10
  $region7: #{basic_block_forward.5} parent=0 // loop_footer_branch
    %9 = sbr.rel target = $region3
  $region8: #{basic_block_forward.5} parent=0 // loop_exit
    _

// kernel: basic_block_forward.4
$region0: #{basic_block_forward.4}
  #allocation0 [shape = 'u32[]', space=smem, size = 0x4, offset = 0x4, fixed_abs, tag = 'smem constant byte address 0x4 - core index']
  #allocation1 [shape = 'u32[144,128]{1,0:T(1,128)}', space=vmem, size = 0x12000, scoped, tag = 'internal scratch']
  %s0 = inlined_call_operand.vmem [shape: f32[512,128], index: 0, kind: input, shape index: {}]
  %s1 = inlined_call_operand.vmem [shape: f32[128,128], index: 1, kind: input, shape index: {}]
  %s2 = inlined_call_operand.vmem [shape: f32[512,128], index: 2, kind: output, shape index: {0}]
  %s3 = inlined_call_operand.vmem [shape: f32[2,8,128], index: 3, kind: output, shape index: {1}]
  %4 = xla_tuple %s2, %s3
  %s5 = sld [smem:[#allocation0]]
  $region49: #{basic_block_forward.4} parent=0
    _
  %s7 = ssub.s32 1, %s5
  %s8 = scalar_select 0, %s7, %s5
  loop: start=0, step=1, limit=4
  $region2: #{basic_block_forward.4} parent=0 // loop_pre_header
    _
  $region3: #{basic_block_forward.4} parent=0 // loop_header
    %s10 = sphi 0, %s14
    %p11 = scmp.ge.s32.totalorder %s10, 4
    %s20 = sphi 0, %s22
    %s23 = sphi 0, %s20
    %s24 = sphi 0, %s23
    %s40 = sphi 0, %s24
    %s44 = sphi 0, %s44
    %s46 = sphi 0, %s44
    %s47 = sphi 0, %s46
    %s61 = sphi 0, %s47
    %s67 = sphi 0, %s69
    %s70 = sphi 0, %s67
    %s71 = sphi 0, %s70
    %s87 = sphi 0, %s71
    %s93 = sphi 0, %s95
    %s96 = sphi 0, %s93
    %s97 = sphi 0, %s96
    %s113 = sphi 0, %s97
  $region4: #{basic_block_forward.4} parent=0 // loop_header_branch
    %13 = sbr.rel (%p11) target = $region8
  $region5: #{basic_block_forward.4} parent=0 // loop_body
    %s15 = ssub.s32 %s10, 1
    %s16 = ssub.s32 %s10, 2
    %s17 = sadd.s32 %s10, 1
    %s18 = ssub.s32 %s10, %s17
    %p19 = scmp.eq.s32.totalorder %s18, 0
    %s21 = sadd.s32 %s20, 1
    %s22 = scalar_select %p19, %s20, %s21
    %p25 = pneg %p19
    %p26 = scmp.eq.s32.totalorder %s10, 1
    %p27 = por %p25, %p26
    %p28 = scmp.ne.s32.totalorder %s20, %s23
    %p29 = scmp.eq.s32.totalorder %s10, 0
    %p30 = por %p28, %p29
    %p31 = scmp.ne.s32.totalorder %s20, %s23
    %p32 = scmp.eq.s32.totalorder %s15, 1
    %p33 = por %p31, %p32
    %p34 = scmp.ne.s32.totalorder %s23, %s24
    %p35 = scmp.eq.s32.totalorder %s15, 0
    %p36 = por %p34, %p35
    %p37 = scmp.ne.s32.totalorder %s23, %s24
    %p38 = scmp.eq.s32.totalorder %s16, 1
    %p39 = por %p37, %p38
    %p41 = scmp.ne.s32.totalorder %s24, %s40
    %p42 = scmp.eq.s32.totalorder %s16, 0
    %p43 = por %p41, %p42
    %s45 = sadd.s32 %s44, 1
    %p48 = scmp.eq.s32.totalorder %s10, 1
    %p49 = scmp.ne.s32.totalorder %s44, %s46
    %p50 = scmp.eq.s32.totalorder %s10, 0
    %p51 = por %p49, %p50
    %p52 = scmp.ne.s32.totalorder %s44, %s46
    %p53 = scmp.eq.s32.totalorder %s15, 1
    %p54 = por %p52, %p53
    %p55 = scmp.ne.s32.totalorder %s46, %s47
    %p56 = scmp.eq.s32.totalorder %s15, 0
    %p57 = por %p55, %p56
    %p58 = scmp.ne.s32.totalorder %s46, %s47
    %p59 = scmp.eq.s32.totalorder %s16, 1
    %p60 = por %p58, %p59
    %p62 = scmp.ne.s32.totalorder %s47, %s61
    %p63 = scmp.eq.s32.totalorder %s16, 0
    %p64 = por %p62, %p63
    %s65 = ssub.s32 %s10, %s17
    %p66 = scmp.eq.s32.totalorder %s65, 0
    %s68 = sadd.s32 %s67, 1
    %s69 = scalar_select %p66, %s67, %s68
    %p72 = pneg %p66
    %p73 = scmp.eq.s32.totalorder %s10, 1
    %p74 = por %p72, %p73
    %p75 = scmp.ne.s32.totalorder %s67, %s70
    %p76 = scmp.eq.s32.totalorder %s10, 0
    %p77 = por %p75, %p76
    %p78 = scmp.ne.s32.totalorder %s67, %s70
    %p79 = scmp.eq.s32.totalorder %s15, 1
    %p80 = por %p78, %p79
    %p81 = scmp.ne.s32.totalorder %s70, %s71
    %p82 = scmp.eq.s32.totalorder %s15, 0
    %p83 = por %p81, %p82
    %p84 = scmp.ne.s32.totalorder %s70, %s71
    %p85 = scmp.eq.s32.totalorder %s16, 1
    %p86 = por %p84, %p85
    %p88 = scmp.ne.s32.totalorder %s71, %s87
    %p89 = scmp.eq.s32.totalorder %s16, 0
    %p90 = por %p88, %p89
    %s91 = ssub.s32 %s10, %s17
    %p92 = scmp.eq.s32.totalorder %s91, 0
    %s94 = sadd.s32 %s93, 1
    %s95 = scalar_select %p92, %s93, %s94
    %p98 = pneg %p92
    %p99 = scmp.eq.s32.totalorder %s10, 1
    %p100 = por %p98, %p99
    %p101 = scmp.ne.s32.totalorder %s93, %s96
    %p102 = scmp.eq.s32.totalorder %s10, 0
    %p103 = por %p101, %p102
    %p104 = scmp.ne.s32.totalorder %s93, %s96
    %p105 = scmp.eq.s32.totalorder %s15, 1
    %p106 = por %p104, %p105
    %p107 = scmp.ne.s32.totalorder %s96, %s97
    %p108 = scmp.eq.s32.totalorder %s15, 0
    %p109 = por %p107, %p108
    %p110 = scmp.ne.s32.totalorder %s96, %s97
    %p111 = scmp.eq.s32.totalorder %s16, 1
    %p112 = por %p110, %p111
    %p114 = scmp.ne.s32.totalorder %s97, %s113
    %p115 = scmp.eq.s32.totalorder %s16, 0
    %p116 = por %p114, %p115
    %p117 = scmp.le.s32.totalorder 1, %s10
    %p118 = scmp.lt.s32.totalorder %s10, 3
    %p119 = pnand %p117, %p118
    %p120 = pneg %p119
    // Predicated region
    $region9: #{basic_block_forward.4} parent=5 // pred_check
      _
    $region10: #{basic_block_forward.4} parent=5 // pred_check_branch
      %122 = sbr.rel (%p119) target = $region12
    $region11: #{basic_block_forward.4} parent=5 // pred_region
      %s123 = ssub.s32 %s10, 1
      // Predicated region
      $region13: #{basic_block_forward.4} parent=11 // pred_check
        %p124 = pneg %p57
      $region14: #{basic_block_forward.4} parent=11 // pred_check_branch
        %126 = sbr.rel (%p124) target = $region16
      $region15: #{basic_block_forward.4} parent=11 // pred_region
        _
      $region16: #{basic_block_forward.4} parent=11 // pred_fallthru
        _
    $region12: #{basic_block_forward.4} parent=5 // pred_fallthru
      _
    %p127 = scmp.lt.s32.totalorder %s10, 2
    // Predicated region
    $region17: #{basic_block_forward.4} parent=5 // pred_check
      %p128 = pneg %p127
    $region18: #{basic_block_forward.4} parent=5 // pred_check_branch
      %130 = sbr.rel (%p128) target = $region20
    $region19: #{basic_block_forward.4} parent=5 // pred_region
      // Predicated region
      $region21: #{basic_block_forward.4} parent=19 // pred_check
        %p131 = pneg %p30
      $region22: #{basic_block_forward.4} parent=19 // pred_check_branch
        %133 = sbr.rel (%p131) target = $region24
      $region23: #{basic_block_forward.4} parent=19 // pred_region
        %s134 = smul.u32 32, %s10
        %p135 = scmp.lt.s32.totalorder %s134, 63
        %s136 = scalar_select %p135, %s134, 63
        %s137 = smul.addr %s136, 8
        %s138 = scalar_lea.vmem %s0, %s137
        %s139 = smul.u32 32, %s10
      $region24: #{basic_block_forward.4} parent=19 // pred_fallthru
        _
    $region20: #{basic_block_forward.4} parent=5 // pred_fallthru
      _
    %p140 = scmp.le.s32.totalorder 1, %s10
    %p141 = scmp.lt.s32.totalorder %s10, 3
    %p142 = pnand %p140, %p141
    %p143 = pneg %p142
    // Predicated region
    $region25: #{basic_block_forward.4} parent=5 // pred_check
      _
    $region26: #{basic_block_forward.4} parent=5 // pred_check_branch
      %145 = sbr.rel (%p142) target = $region28
    $region27: #{basic_block_forward.4} parent=5 // pred_region
      %s146 = ssub.s32 %s10, 1
      %s147 = smul.u32 32, %s15
      %p148 = scmp.lt.s32.totalorder %s147, 63
      %s149 = scalar_select %p148, %s147, 63
      %s150 = smul.addr %s149, 8
      %s151 = scalar_lea.vmem %s0, %s150
      %p152 = pneg %p36
      %p153 = pneg %p33
      %p154 = pneg %p57
      %p155 = pneg %p54
      %p156 = pneg %p83
      %p157 = pneg %p80
      %s158 = smul.u32 32, %s15
      %p159 = scmp.lt.s32.totalorder %s158, 63
      %s160 = scalar_select %p159, %s158, 63
      %s161 = smul.addr %s160, 8
      %s162 = scalar_lea.vmem %s2, %s161
      %p163 = pneg %p109
      %p164 = pneg %p106
      %p165 = scmp.lt.s32.totalorder %s15, 1
      %s166 = scalar_select %p165, %s15, 1
      %s167 = smul.addr %s166, 8
      %s168 = scalar_lea.vmem %s3, %s167
      %s169 = smul.u32 32, %s15
      %p170 = scmp.lt.s32.totalorder %s169, 63
      %s171 = scalar_select %p170, %s169, 63
      %s172 = smul.addr %s171, 8
      %s173 = scalar_lea.vmem %s0, %s172
      %s174 = smul.u32 32, %s15
      %s175 = smul.u32 32, %s15
      %p176 = scmp.lt.s32.totalorder %s175, 63
      %s177 = scalar_select %p176, %s175, 63
      %s178 = smul.addr %s177, 8
      %s179 = scalar_lea.vmem %s2, %s178
      %s180 = smul.u32 32, %s15
      %p181 = scmp.lt.s32.totalorder %s15, 1
      %s182 = scalar_select %p181, %s15, 1
      %s183 = smul.addr %s182, 8
      %s184 = scalar_lea.vmem %s3, %s183
      %v185 = vld [vmem:[%s173] sm:$0xff]
      %v186 = vld [vmem:[%s173 + $0x8] sm:$0xff]
      %v187 = vld [vmem:[%s173 + $0x10] sm:$0xff]
      %v188 = vld [vmem:[%s173 + $0x18] sm:$0xff]
      %v189 = vld [vmem:[%s173 + $0x20] sm:$0xff]
      %v190 = vld [vmem:[%s173 + $0x28] sm:$0xff]
      %v191 = vld [vmem:[%s173 + $0x30] sm:$0xff]
      %v192 = vld [vmem:[%s173 + $0x38] sm:$0xff]
      %v193 = vld [vmem:[%s173 + $0x40] sm:$0xff]
      %v194 = vld [vmem:[%s173 + $0x48] sm:$0xff]
      %v195 = vld [vmem:[%s173 + $0x50] sm:$0xff]
      %v196 = vld [vmem:[%s173 + $0x58] sm:$0xff]
      %v197 = vld [vmem:[%s173 + $0x60] sm:$0xff]
      %v198 = vld [vmem:[%s173 + $0x68] sm:$0xff]
      %v199 = vld [vmem:[%s173 + $0x70] sm:$0xff]
      %v200 = vld [vmem:[%s173 + $0x78] sm:$0xff]
      %v201 = vld [vmem:[%s173 + $0x80] sm:$0xff]
      %v202 = vld [vmem:[%s173 + $0x88] sm:$0xff]
      %v203 = vld [vmem:[%s173 + $0x90] sm:$0xff]
      %v204 = vld [vmem:[%s173 + $0x98] sm:$0xff]
      %v205 = vld [vmem:[%s173 + $0xa0] sm:$0xff]
      %v206 = vld [vmem:[%s173 + $0xa8] sm:$0xff]
      %v207 = vld [vmem:[%s173 + $0xb0] sm:$0xff]
      %v208 = vld [vmem:[%s173 + $0xb8] sm:$0xff]
      %v209 = vld [vmem:[%s173 + $0xc0] sm:$0xff]
      %v210 = vld [vmem:[%s173 + $0xc8] sm:$0xff]
      %v211 = vld [vmem:[%s173 + $0xd0] sm:$0xff]
      %v212 = vld [vmem:[%s173 + $0xd8] sm:$0xff]
      %v213 = vld [vmem:[%s173 + $0xe0] sm:$0xff]
      %v214 = vld [vmem:[%s173 + $0xe8] sm:$0xff]
      %v215 = vld [vmem:[%s173 + $0xf0] sm:$0xff]
      %v216 = vld [vmem:[%s173 + $0xf8] sm:$0xff]
      %v217 = vld [vmem:[%s1] sm:$0xff]
      %v218 = vld [vmem:[%s1 + $0x8] sm:$0xff]
      %v219 = vld [vmem:[%s1 + $0x10] sm:$0xff]
      %v220 = vld [vmem:[%s1 + $0x18] sm:$0xff]
      %v221 = vld [vmem:[%s1 + $0x20] sm:$0xff]
      %v222 = vld [vmem:[%s1 + $0x28] sm:$0xff]
      %v223 = vld [vmem:[%s1 + $0x30] sm:$0xff]
      %v224 = vld [vmem:[%s1 + $0x38] sm:$0xff]
      %v225 = vld [vmem:[%s1 + $0x40] sm:$0xff]
      %v226 = vld [vmem:[%s1 + $0x48] sm:$0xff]
      %v227 = vld [vmem:[%s1 + $0x50] sm:$0xff]
      %v228 = vld [vmem:[%s1 + $0x58] sm:$0xff]
      %v229 = vld [vmem:[%s1 + $0x60] sm:$0xff]
      %v230 = vld [vmem:[%s1 + $0x68] sm:$0xff]
      %v231 = vld [vmem:[%s1 + $0x70] sm:$0xff]
      %v232 = vld [vmem:[%s1 + $0x78] sm:$0xff]
      %233 = vmatprep.subr.mxu0 0.0
      %234 = vmatpush1.msra.mxu0 %v217
      %235 = vmatprep.subr.mxu0 0.0
      %236 = vmatpush1.msra.mxu0 %v218
      %237 = vmatprep.subr.mxu0 0.0
      %238 = vmatpush1.msra.mxu0 %v219
      %239 = vmatprep.subr.mxu0 0.0
      %240 = vmatpush1.msra.mxu0 %v220
      %241 = vmatprep.subr.mxu0 0.0
      %242 = vmatpush1.msra.mxu0 %v221
      %243 = vmatprep.subr.mxu0 0.0
      %244 = vmatpush1.msra.mxu0 %v222
      %245 = vmatprep.subr.mxu0 0.0
      %246 = vmatpush1.msra.mxu0 %v223
      %247 = vmatprep.subr.mxu0 0.0
      %248 = vmatpush1.msra.mxu0 %v224
      %249 = vmatprep.subr.mxu0 0.0
      %250 = vmatpush1.msra.mxu0 %v225
      %251 = vmatprep.subr.mxu0 0.0
      %252 = vmatpush1.msra.mxu0 %v226
      %253 = vmatprep.subr.mxu0 0.0
      %254 = vmatpush1.msra.mxu0 %v227
      %255 = vmatprep.subr.mxu0 0.0
      %256 = vmatpush1.msra.mxu0 %v228
      %257 = vmatprep.subr.mxu0 0.0
      %258 = vmatpush1.msra.mxu0 %v229
      %259 = vmatprep.subr.mxu0 0.0
      %260 = vmatpush1.msra.mxu0 %v230
      %261 = vmatprep.subr.mxu0 0.0
      %262 = vmatpush1.msra.mxu0 %v231
      %263 = vmatprep.subr.mxu0 0.0
      %264 = vmatpush1.msra.mxu0 %v232
      %265 = vmatprep.subr.mxu0 0.0
      %266 = vmatpush1.msra.mxu0 0.0
      %267 = vmatprep.subr.mxu0 0.0
      %268 = vmatpush1.msra.mxu0 0.0
      %269 = vmatprep.subr.mxu0 0.0
      %270 = vmatpush1.msra.mxu0 0.0
      %271 = vmatprep.subr.mxu0 0.0
      %272 = vmatpush1.msra.mxu0 0.0
      %273 = vmatprep.subr.mxu0 0.0
      %274 = vmatpush1.msra.mxu0 0.0
      %275 = vmatprep.subr.mxu0 0.0
      %276 = vmatpush1.msra.mxu0 0.0
      %277 = vmatprep.subr.mxu0 0.0
      %278 = vmatpush1.msra.mxu0 0.0
      %279 = vmatprep.subr.mxu0 0.0
      %280 = vmatpush1.msra.mxu0 0.0
      %281 = vmatprep.subr.mxu0 0.0
      %282 = vmatpush1.msra.mxu0 0.0
      %283 = vmatprep.subr.mxu0 0.0
      %284 = vmatpush1.msra.mxu0 0.0
      %285 = vmatprep.subr.mxu0 0.0
      %286 = vmatpush1.msra.mxu0 0.0
      %287 = vmatprep.subr.mxu0 0.0
      %288 = vmatpush1.msra.mxu0 0.0
      %289 = vmatprep.subr.mxu0 0.0
      %290 = vmatpush1.msra.mxu0 0.0
      %291 = vmatprep.subr.mxu0 0.0
      %292 = vmatpush1.msra.mxu0 0.0
      %293 = vmatprep.subr.mxu0 0.0
      %294 = vmatpush1.msra.mxu0 0.0
      %295 = vmatprep.subr.mxu0 0.0
      %296 = vmatpush1.msra.mxu0 0.0
      %297 = vmatprep.mubr.f32.mxu0 0.0
      %298 = vmatmul.mubr.f32.gmra.mrb[0].mxu0 %v185
      %v299 = vpop.f32.mrb[0].mxu0
      %v300 = vadd.f32 0.0, %v299
      %v301 = vpop.f32.mrb[0].mxu0
      %302 = vmatprep.mubr.f32.mxu0 0.0
      %303 = vmatmul.mubr.f32.gmra.mrb[0].mxu0 %v186
      %v304 = vpop.f32.mrb[0].mxu0
      %v305 = vadd.f32 0.0, %v304
      %v306 = vpop.f32.mrb[0].mxu0
      %307 = vmatprep.mubr.f32.mxu0 0.0
      %308 = vmatmul.mubr.f32.gmra.mrb[0].mxu0 %v187
      %v309 = vpop.f32.mrb[0].mxu0
      %v310 = vadd.f32 0.0, %v309
      %v311 = vpop.f32.mrb[0].mxu0
      %312 = vmatprep.mubr.f32.mxu0 0.0
      %313 = vmatmul.mubr.f32.gmra.mrb[0].mxu0 %v188
      %v314 = vpop.f32.mrb[0].mxu0
      %v315 = vadd.f32 0.0, %v314
      %v316 = vpop.f32.mrb[0].mxu0
      %317 = vmatprep.mubr.f32.mxu0 0.0
      %318 = vmatmul.mubr.f32.gmra.mrb[0].mxu0 %v189
      %v319 = vpop.f32.mrb[0].mxu0
      %v320 = vadd.f32 0.0, %v319
      %v321 = vpop.f32.mrb[0].mxu0
      %322 = vmatprep.mubr.f32.mxu0 0.0
      %323 = vmatmul.mubr.f32.gmra.mrb[0].mxu0 %v190
      %v324 = vpop.f32.mrb[0].mxu0
      %v325 = vadd.f32 0.0, %v324
      %v326 = vpop.f32.mrb[0].mxu0
      %327 = vmatprep.mubr.f32.mxu0 0.0
      %328 = vmatmul.mubr.f32.gmra.mrb[0].mxu0 %v191
      %v329 = vpop.f32.mrb[0].mxu0
      %v330 = vadd.f32 0.0, %v329
      %v331 = vpop.f32.mrb[0].mxu0
      %332 = vmatprep.mubr.f32.mxu0 0.0
      %333 = vmatmul.mubr.f32.gmra.mrb[0].mxu0 %v192
      %v334 = vpop.f32.mrb[0].mxu0
      %v335 = vadd.f32 0.0, %v334
      %v336 = vpop.f32.mrb[0].mxu0
      %337 = vmatprep.mubr.f32.mxu0 0.0
      %338 = vmatmul.mubr.f32.gmra.mrb[0].mxu0 %v193
      %v339 = vpop.f32.mrb[0].mxu0
      %v340 = vadd.f32 0.0, %v339
      %v341 = vpop.f32.mrb[0].mxu0
      %342 = vmatprep.mubr.f32.mxu0 0.0
      %343 = vmatmul.mubr.f32.gmra.mrb[0].mxu0 %v194
      %v344 = vpop.f32.mrb[0].mxu0
      %v345 = vadd.f32 0.0, %v344
      %v346 = vpop.f32.mrb[0].mxu0
      %347 = vmatprep.mubr.f32.mxu0 0.0
      %348 = vmatmul.mubr.f32.gmra.mrb[0].mxu0 %v195
      %v349 = vpop.f32.mrb[0].mxu0
      %v350 = vadd.f32 0.0, %v349
      %v351 = vpop.f32.mrb[0].mxu0
      %352 = vmatprep.mubr.f32.mxu0 0.0
      %353 = vmatmul.mubr.f32.gmra.mrb[0].mxu0 %v196
      %v354 = vpop.f32.mrb[0].mxu0
      %v355 = vadd.f32 0.0, %v354
      %v356 = vpop.f32.mrb[0].mxu0
      %357 = vmatprep.mubr.f32.mxu0 0.0
      %358 = vmatmul.mubr.f32.gmra.mrb[0].mxu0 %v197
      %v359 = vpop.f32.mrb[0].mxu0
      %v360 = vadd.f32 0.0, %v359
      %v361 = vpop.f32.mrb[0].mxu0
      %362 = vmatprep.mubr.f32.mxu0 0.0
      %363 = vmatmul.mubr.f32.gmra.mrb[0].mxu0 %v198
      %v364 = vpop.f32.mrb[0].mxu0
      %v365 = vadd.f32 0.0, %v364
      %v366 = vpop.f32.mrb[0].mxu0
      %367 = vmatprep.mubr.f32.mxu0 0.0
      %368 = vmatmul.mubr.f32.gmra.mrb[0].mxu0 %v199
      %v369 = vpop.f32.mrb[0].mxu0
      %v370 = vadd.f32 0.0, %v369
      %v371 = vpop.f32.mrb[0].mxu0
      %372 = vmatprep.mubr.f32.mxu0 0.0
      %373 = vmatmul.mubr.f32.gmra.mrb[0].mxu0 %v200
      %v374 = vpop.f32.mrb[0].mxu0
      %v375 = vadd.f32 0.0, %v374
      %v376 = vpop.f32.mrb[0].mxu0
      %377 = vmatprep.mubr.f32.mxu0 0.0
      %378 = vmatmul.mubr.f32.gmra.mrb[0].mxu0 %v201
      %v379 = vpop.f32.mrb[0].mxu0
      %v380 = vadd.f32 0.0, %v379
      %v381 = vpop.f32.mrb[0].mxu0
      %382 = vmatprep.mubr.f32.mxu0 0.0
      %383 = vmatmul.mubr.f32.gmra.mrb[0].mxu0 %v202
      %v384 = vpop.f32.mrb[0].mxu0
      %v385 = vadd.f32 0.0, %v384
      %v386 = vpop.f32.mrb[0].mxu0
      %387 = vmatprep.mubr.f32.mxu0 0.0
      %388 = vmatmul.mubr.f32.gmra.mrb[0].mxu0 %v203
      %v389 = vpop.f32.mrb[0].mxu0
      %v390 = vadd.f32 0.0, %v389
      %v391 = vpop.f32.mrb[0].mxu0
      %392 = vmatprep.mubr.f32.mxu0 0.0
      %393 = vmatmul.mubr.f32.gmra.mrb[0].mxu0 %v204
      %v394 = vpop.f32.mrb[0].mxu0
      %v395 = vadd.f32 0.0, %v394
      %v396 = vpop.f32.mrb[0].mxu0
      %397 = vmatprep.mubr.f32.mxu0 0.0
      %398 = vmatmul.mubr.f32.gmra.mrb[0].mxu0 %v205
      %v399 = vpop.f32.mrb[0].mxu0
      %v400 = vadd.f32 0.0, %v399
      %v401 = vpop.f32.mrb[0].mxu0
      %402 = vmatprep.mubr.f32.mxu0 0.0
      %403 = vmatmul.mubr.f32.gmra.mrb[0].mxu0 %v206
      %v404 = vpop.f32.mrb[0].mxu0
      %v405 = vadd.f32 0.0, %v404
      %v406 = vpop.f32.mrb[0].mxu0
      %407 = vmatprep.mubr.f32.mxu0 0.0
      %408 = vmatmul.mubr.f32.gmra.mrb[0].mxu0 %v207
      %v409 = vpop.f32.mrb[0].mxu0
      %v410 = vadd.f32 0.0, %v409
      %v411 = vpop.f32.mrb[0].mxu0
      %412 = vmatprep.mubr.f32.mxu0 0.0
      %413 = vmatmul.mubr.f32.gmra.mrb[0].mxu0 %v208
      %v414 = vpop.f32.mrb[0].mxu0
      %v415 = vadd.f32 0.0, %v414
      %v416 = vpop.f32.mrb[0].mxu0
      %417 = vmatprep.mubr.f32.mxu0 0.0
      %418 = vmatmul.mubr.f32.gmra.mrb[0].mxu0 %v209
      %v419 = vpop.f32.mrb[0].mxu0
      %v420 = vadd.f32 0.0, %v419
      %v421 = vpop.f32.mrb[0].mxu0
      %422 = vmatprep.mubr.f32.mxu0 0.0
      %423 = vmatmul.mubr.f32.gmra.mrb[0].mxu0 %v210
      %v424 = vpop.f32.mrb[0].mxu0
      %v425 = vadd.f32 0.0, %v424
      %v426 = vpop.f32.mrb[0].mxu0
      %427 = vmatprep.mubr.f32.mxu0 0.0
      %428 = vmatmul.mubr.f32.gmra.mrb[0].mxu0 %v211
      %v429 = vpop.f32.mrb[0].mxu0
      %v430 = vadd.f32 0.0, %v429
      %v431 = vpop.f32.mrb[0].mxu0
      %432 = vmatprep.mubr.f32.mxu0 0.0
      %433 = vmatmul.mubr.f32.gmra.mrb[0].mxu0 %v212
      %v434 = vpop.f32.mrb[0].mxu0
      %v435 = vadd.f32 0.0, %v434
      %v436 = vpop.f32.mrb[0].mxu0
      %437 = vmatprep.mubr.f32.mxu0 0.0
      %438 = vmatmul.mubr.f32.gmra.mrb[0].mxu0 %v213
      %v439 = vpop.f32.mrb[0].mxu0
      %v440 = vadd.f32 0.0, %v439
      %v441 = vpop.f32.mrb[0].mxu0
      %442 = vmatprep.mubr.f32.mxu0 0.0
      %443 = vmatmul.mubr.f32.gmra.mrb[0].mxu0 %v214
      %v444 = vpop.f32.mrb[0].mxu0
      %v445 = vadd.f32 0.0, %v444
      %v446 = vpop.f32.mrb[0].mxu0
      %447 = vmatprep.mubr.f32.mxu0 0.0
      %448 = vmatmul.mubr.f32.gmra.mrb[0].mxu0 %v215
      %v449 = vpop.f32.mrb[0].mxu0
      %v450 = vadd.f32 0.0, %v449
      %v451 = vpop.f32.mrb[0].mxu0
      %452 = vmatprep.mubr.f32.mxu0 0.0
      %453 = vmatmul.mubr.f32.gmra.mrb[0].mxu0 %v216
      %v454 = vpop.f32.mrb[0].mxu0
      %v455 = vadd.f32 0.0, %v454
      %v456 = vpop.f32.mrb[0].mxu0
      %457 = vdwg.mxu0
      %458 = vst [vmem:[%s179] sm:$0xff] %v300
      %459 = vst [vmem:[%s179 + $0x8] sm:$0xff] %v305
      %460 = vst [vmem:[%s179 + $0x10] sm:$0xff] %v310
      %461 = vst [vmem:[%s179 + $0x18] sm:$0xff] %v315
      %462 = vst [vmem:[%s179 + $0x20] sm:$0xff] %v320
      %463 = vst [vmem:[%s179 + $0x28] sm:$0xff] %v325
      %464 = vst [vmem:[%s179 + $0x30] sm:$0xff] %v330
      %465 = vst [vmem:[%s179 + $0x38] sm:$0xff] %v335
      %466 = vst [vmem:[%s179 + $0x40] sm:$0xff] %v340
      %467 = vst [vmem:[%s179 + $0x48] sm:$0xff] %v345
      %468 = vst [vmem:[%s179 + $0x50] sm:$0xff] %v350
      %469 = vst [vmem:[%s179 + $0x58] sm:$0xff] %v355
      %470 = vst [vmem:[%s179 + $0x60] sm:$0xff] %v360
      %471 = vst [vmem:[%s179 + $0x68] sm:$0xff] %v365
      %472 = vst [vmem:[%s179 + $0x70] sm:$0xff] %v370
      %473 = vst [vmem:[%s179 + $0x78] sm:$0xff] %v375
      %474 = vst [vmem:[%s179 + $0x80] sm:$0xff] %v380
      %475 = vst [vmem:[%s179 + $0x88] sm:$0xff] %v385
      %476 = vst [vmem:[%s179 + $0x90] sm:$0xff] %v390
      %477 = vst [vmem:[%s179 + $0x98] sm:$0xff] %v395
      %478 = vst [vmem:[%s179 + $0xa0] sm:$0xff] %v400
      %479 = vst [vmem:[%s179 + $0xa8] sm:$0xff] %v405
      %480 = vst [vmem:[%s179 + $0xb0] sm:$0xff] %v410
      %481 = vst [vmem:[%s179 + $0xb8] sm:$0xff] %v415
      %482 = vst [vmem:[%s179 + $0xc0] sm:$0xff] %v420
      %483 = vst [vmem:[%s179 + $0xc8] sm:$0xff] %v425
      %484 = vst [vmem:[%s179 + $0xd0] sm:$0xff] %v430
      %485 = vst [vmem:[%s179 + $0xd8] sm:$0xff] %v435
      %486 = vst [vmem:[%s179 + $0xe0] sm:$0xff] %v440
      %487 = vst [vmem:[%s179 + $0xe8] sm:$0xff] %v445
      %488 = vst [vmem:[%s179 + $0xf0] sm:$0xff] %v450
      %489 = vst [vmem:[%s179 + $0xf8] sm:$0xff] %v455
      %v490 = vadd.f32 %v300, %v305
      %v491 = vadd.f32 %v490, %v310
      %v492 = vadd.f32 %v491, %v315
      %v493 = vadd.f32 %v492, %v320
      %v494 = vadd.f32 %v493, %v325
      %v495 = vadd.f32 %v494, %v330
      %v496 = vadd.f32 %v495, %v335
      %v497 = vadd.f32 %v496, %v340
      %v498 = vadd.f32 %v497, %v345
      %v499 = vadd.f32 %v498, %v350
      %v500 = vadd.f32 %v499, %v355
      %v501 = vadd.f32 %v500, %v360
      %v502 = vadd.f32 %v501, %v365
      %v503 = vadd.f32 %v502, %v370
      %v504 = vadd.f32 %v503, %v375
      %v505 = vadd.f32 %v504, %v380
      %v506 = vadd.f32 %v505, %v385
      %v507 = vadd.f32 %v506, %v390
      %v508 = vadd.f32 %v507, %v395
      %v509 = vadd.f32 %v508, %v400
      %v510 = vadd.f32 %v509, %v405
      %v511 = vadd.f32 %v510, %v410
      %v512 = vadd.f32 %v511, %v415
      %v513 = vadd.f32 %v512, %v420
      %v514 = vadd.f32 %v513, %v425
      %v515 = vadd.f32 %v514, %v430
      %v516 = vadd.f32 %v515, %v435
      %v517 = vadd.f32 %v516, %v440
      %v518 = vadd.f32 %v517, %v445
      %v519 = vadd.f32 %v518, %v450
      %v520 = vadd.f32 %v519, %v455
      %v521 = vrot.slane %v520, 4
      %v522 = vadd.f32 %v520, %v521
      %v523 = vrot.slane %v522, 2
      %v524 = vadd.f32 %v522, %v523
      %v525 = vrot.slane %v524, 1
      %v526 = vadd.f32 %v524, %v525
      %v527 = vmul.f32 %v300, %v300
      %v528 = vmul.f32 %v305, %v305
      %v529 = vmul.f32 %v310, %v310
      %v530 = vmul.f32 %v315, %v315
      %v531 = vmul.f32 %v320, %v320
      %v532 = vmul.f32 %v325, %v325
      %v533 = vmul.f32 %v330, %v330
      %v534 = vmul.f32 %v335, %v335
      %v535 = vmul.f32 %v340, %v340
      %v536 = vmul.f32 %v345, %v345
      %v537 = vmul.f32 %v350, %v350
      %v538 = vmul.f32 %v355, %v355
      %v539 = vmul.f32 %v360, %v360
      %v540 = vmul.f32 %v365, %v365
      %v541 = vmul.f32 %v370, %v370
      %v542 = vmul.f32 %v375, %v375
      %v543 = vmul.f32 %v380, %v380
      %v544 = vmul.f32 %v385, %v385
      %v545 = vmul.f32 %v390, %v390
      %v546 = vmul.f32 %v395, %v395
      %v547 = vmul.f32 %v400, %v400
      %v548 = vmul.f32 %v405, %v405
      %v549 = vmul.f32 %v410, %v410
      %v550 = vmul.f32 %v415, %v415
      %v551 = vmul.f32 %v420, %v420
      %v552 = vmul.f32 %v425, %v425
      %v553 = vmul.f32 %v430, %v430
      %v554 = vmul.f32 %v435, %v435
      %v555 = vmul.f32 %v440, %v440
      %v556 = vmul.f32 %v445, %v445
      %v557 = vmul.f32 %v450, %v450
      %v558 = vmul.f32 %v455, %v455
      %v559 = vadd.f32 %v527, %v528
      %v560 = vadd.f32 %v559, %v529
      %v561 = vadd.f32 %v560, %v530
      %v562 = vadd.f32 %v561, %v531
      %v563 = vadd.f32 %v562, %v532
      %v564 = vadd.f32 %v563, %v533
      %v565 = vadd.f32 %v564, %v534
      %v566 = vadd.f32 %v565, %v535
      %v567 = vadd.f32 %v566, %v536
      %v568 = vadd.f32 %v567, %v537
      %v569 = vadd.f32 %v568, %v538
      %v570 = vadd.f32 %v569, %v539
      %v571 = vadd.f32 %v570, %v540
      %v572 = vadd.f32 %v571, %v541
      %v573 = vadd.f32 %v572, %v542
      %v574 = vadd.f32 %v573, %v543
      %v575 = vadd.f32 %v574, %v544
      %v576 = vadd.f32 %v575, %v545
      %v577 = vadd.f32 %v576, %v546
      %v578 = vadd.f32 %v577, %v547
      %v579 = vadd.f32 %v578, %v548
      %v580 = vadd.f32 %v579, %v549
      %v581 = vadd.f32 %v580, %v550
      %v582 = vadd.f32 %v581, %v551
      %v583 = vadd.f32 %v582, %v552
      %v584 = vadd.f32 %v583, %v553
      %v585 = vadd.f32 %v584, %v554
      %v586 = vadd.f32 %v585, %v555
      %v587 = vadd.f32 %v586, %v556
      %v588 = vadd.f32 %v587, %v557
      %v589 = vadd.f32 %v588, %v558
      %v590 = vrot.slane %v589, 4
      %v591 = vadd.f32 %v589, %v590
      %v592 = vrot.slane %v591, 2
      %v593 = vadd.f32 %v591, %v592
      %v594 = vrot.slane %v593, 1
      %v595 = vadd.f32 %v593, %v594
      %vm596 = vcmask 1040384
      %v597 = vsel %vm596, %v526, %v595
      %vm598 = vcmask 1041408
      %v599 = vsel %vm598, %v597, 0.0
      %600 = vst [vmem:[%s184] sm:$0xff] %v599
      %s601 = smul.u32 32, %s15
      %p602 = scmp.lt.s32.totalorder %s601, 63
      %s603 = scalar_select %p602, %s601, 63
      %s604 = smul.addr %s603, 8
      %s605 = scalar_lea.vmem %s2, %s604
      %p606 = scmp.lt.s32.totalorder %s15, 1
      %s607 = scalar_select %p606, %s15, 1
      %s608 = smul.addr %s607, 8
      %s609 = scalar_lea.vmem %s3, %s608
      // Predicated region
      $region29: #{basic_block_forward.4} parent=27 // pred_check
        %p610 = pneg %p80
      $region30: #{basic_block_forward.4} parent=27 // pred_check_branch
        %612 = sbr.rel (%p610) target = $region32
      $region31: #{basic_block_forward.4} parent=27 // pred_region
        %s613 = smul.u32 32, %s15
      $region32: #{basic_block_forward.4} parent=27 // pred_fallthru
        _
      // Predicated region
      $region33: #{basic_block_forward.4} parent=27 // pred_check
        %p614 = pneg %p106
      $region34: #{basic_block_forward.4} parent=27 // pred_check_branch
        %616 = sbr.rel (%p614) target = $region36
      $region35: #{basic_block_forward.4} parent=27 // pred_region
        _
      $region36: #{basic_block_forward.4} parent=27 // pred_fallthru
        _
    $region28: #{basic_block_forward.4} parent=5 // pred_fallthru
      _
    %p617 = scmp.le.s32.totalorder 2, %s10
    // Predicated region
    $region37: #{basic_block_forward.4} parent=5 // pred_check
      %p618 = pneg %p617
    $region38: #{basic_block_forward.4} parent=5 // pred_check_branch
      %620 = sbr.rel (%p618) target = $region40
    $region39: #{basic_block_forward.4} parent=5 // pred_region
      %s621 = ssub.s32 %s10, 2
      // Predicated region
      $region41: #{basic_block_forward.4} parent=39 // pred_check
        %p622 = pneg %p86
      $region42: #{basic_block_forward.4} parent=39 // pred_check_branch
        %624 = sbr.rel (%p622) target = $region44
      $region43: #{basic_block_forward.4} parent=39 // pred_region
        %s625 = smul.u32 32, %s16
        %p626 = scmp.lt.s32.totalorder %s625, 63
        %s627 = scalar_select %p626, %s625, 63
        %s628 = smul.addr %s627, 8
        %s629 = scalar_lea.vmem %s2, %s628
      $region44: #{basic_block_forward.4} parent=39 // pred_fallthru
        _
      // Predicated region
      $region45: #{basic_block_forward.4} parent=39 // pred_check
        %p630 = pneg %p112
      $region46: #{basic_block_forward.4} parent=39 // pred_check_branch
        %632 = sbr.rel (%p630) target = $region48
      $region47: #{basic_block_forward.4} parent=39 // pred_region
        %p633 = scmp.lt.s32.totalorder %s16, 1
        %s634 = scalar_select %p633, %s16, 1
        %s635 = smul.addr %s634, 8
        %s636 = scalar_lea.vmem %s3, %s635
      $region48: #{basic_block_forward.4} parent=39 // pred_fallthru
        _
    $region40: #{basic_block_forward.4} parent=5 // pred_fallthru
      _
  $region6: #{basic_block_forward.4} parent=0 // loop_footer
    %s14 = sadd.s32 1, %s10
  $region7: #{basic_block_forward.4} parent=0 // loop_footer_branch
    %9 = sbr.rel target = $region3
  $region8: #{basic_block_forward.4} parent=0 // loop_exit
    _

// kernel: basic_block_forward.7
$region0: #{basic_block_forward.7}
  #allocation0 [shape = 'u32[]', space=smem, size = 0x4, offset = 0x4, fixed_abs, tag = 'smem constant byte address 0x4 - core index']
  #allocation1 [shape = 'u32[144,128]{1,0:T(1,128)}', space=vmem, size = 0x12000, scoped, tag = 'internal scratch']
  %s0 = inlined_call_operand.vmem [shape: f32[512,128], index: 0, kind: input, shape index: {}]
  %s1 = inlined_call_operand.vmem [shape: f32[4,128], index: 1, kind: input, shape index: {}]
  %s2 = inlined_call_operand.vmem [shape: f32[512,128], index: 2, kind: input, shape index: {}]
  %s3 = inlined_call_operand.vmem [shape: f32[512,128], index: 3, kind: output, shape index: {0}]
  %s4 = inlined_call_operand.vmem [shape: f32[512,128], index: 4, kind: output, shape index: {1}]
  %5 = xla_tuple %s3, %s4
  %s6 = sld [smem:[#allocation0]]
  $region53: #{basic_block_forward.7} parent=0
    _
  %s8 = ssub.s32 1, %s6
  %s9 = scalar_select 0, %s8, %s6
  loop: start=0, step=1, limit=4
  $region2: #{basic_block_forward.7} parent=0 // loop_pre_header
    _
  $region3: #{basic_block_forward.7} parent=0 // loop_header
    %s11 = sphi 0, %s15
    %p12 = scmp.ge.s32.totalorder %s11, 4
    %s21 = sphi 0, %s23
    %s24 = sphi 0, %s21
    %s25 = sphi 0, %s24
    %s41 = sphi 0, %s25
    %s45 = sphi 0, %s45
    %s47 = sphi 0, %s45
    %s48 = sphi 0, %s47
    %s62 = sphi 0, %s48
    %s68 = sphi 0, %s70
    %s71 = sphi 0, %s68
    %s72 = sphi 0, %s71
    %s88 = sphi 0, %s72
    %s94 = sphi 0, %s96
    %s97 = sphi 0, %s94
    %s98 = sphi 0, %s97
    %s114 = sphi 0, %s98
    %s120 = sphi 0, %s122
    %s123 = sphi 0, %s120
    %s124 = sphi 0, %s123
    %s140 = sphi 0, %s124
  $region4: #{basic_block_forward.7} parent=0 // loop_header_branch
    %14 = sbr.rel (%p12) target = $region8
  $region5: #{basic_block_forward.7} parent=0 // loop_body
    %s16 = ssub.s32 %s11, 1
    %s17 = ssub.s32 %s11, 2
    %s18 = sadd.s32 %s11, 1
    %s19 = ssub.s32 %s11, %s18
    %p20 = scmp.eq.s32.totalorder %s19, 0
    %s22 = sadd.s32 %s21, 1
    %s23 = scalar_select %p20, %s21, %s22
    %p26 = pneg %p20
    %p27 = scmp.eq.s32.totalorder %s11, 1
    %p28 = por %p26, %p27
    %p29 = scmp.ne.s32.totalorder %s21, %s24
    %p30 = scmp.eq.s32.totalorder %s11, 0
    %p31 = por %p29, %p30
    %p32 = scmp.ne.s32.totalorder %s21, %s24
    %p33 = scmp.eq.s32.totalorder %s16, 1
    %p34 = por %p32, %p33
    %p35 = scmp.ne.s32.totalorder %s24, %s25
    %p36 = scmp.eq.s32.totalorder %s16, 0
    %p37 = por %p35, %p36
    %p38 = scmp.ne.s32.totalorder %s24, %s25
    %p39 = scmp.eq.s32.totalorder %s17, 1
    %p40 = por %p38, %p39
    %p42 = scmp.ne.s32.totalorder %s25, %s41
    %p43 = scmp.eq.s32.totalorder %s17, 0
    %p44 = por %p42, %p43
    %s46 = sadd.s32 %s45, 1
    %p49 = scmp.eq.s32.totalorder %s11, 1
    %p50 = scmp.ne.s32.totalorder %s45, %s47
    %p51 = scmp.eq.s32.totalorder %s11, 0
    %p52 = por %p50, %p51
    %p53 = scmp.ne.s32.totalorder %s45, %s47
    %p54 = scmp.eq.s32.totalorder %s16, 1
    %p55 = por %p53, %p54
    %p56 = scmp.ne.s32.totalorder %s47, %s48
    %p57 = scmp.eq.s32.totalorder %s16, 0
    %p58 = por %p56, %p57
    %p59 = scmp.ne.s32.totalorder %s47, %s48
    %p60 = scmp.eq.s32.totalorder %s17, 1
    %p61 = por %p59, %p60
    %p63 = scmp.ne.s32.totalorder %s48, %s62
    %p64 = scmp.eq.s32.totalorder %s17, 0
    %p65 = por %p63, %p64
    %s66 = ssub.s32 %s11, %s18
    %p67 = scmp.eq.s32.totalorder %s66, 0
    %s69 = sadd.s32 %s68, 1
    %s70 = scalar_select %p67, %s68, %s69
    %p73 = pneg %p67
    %p74 = scmp.eq.s32.totalorder %s11, 1
    %p75 = por %p73, %p74
    %p76 = scmp.ne.s32.totalorder %s68, %s71
    %p77 = scmp.eq.s32.totalorder %s11, 0
    %p78 = por %p76, %p77
    %p79 = scmp.ne.s32.totalorder %s68, %s71
    %p80 = scmp.eq.s32.totalorder %s16, 1
    %p81 = por %p79, %p80
    %p82 = scmp.ne.s32.totalorder %s71, %s72
    %p83 = scmp.eq.s32.totalorder %s16, 0
    %p84 = por %p82, %p83
    %p85 = scmp.ne.s32.totalorder %s71, %s72
    %p86 = scmp.eq.s32.totalorder %s17, 1
    %p87 = por %p85, %p86
    %p89 = scmp.ne.s32.totalorder %s72, %s88
    %p90 = scmp.eq.s32.totalorder %s17, 0
    %p91 = por %p89, %p90
    %s92 = ssub.s32 %s11, %s18
    %p93 = scmp.eq.s32.totalorder %s92, 0
    %s95 = sadd.s32 %s94, 1
    %s96 = scalar_select %p93, %s94, %s95
    %p99 = pneg %p93
    %p100 = scmp.eq.s32.totalorder %s11, 1
    %p101 = por %p99, %p100
    %p102 = scmp.ne.s32.totalorder %s94, %s97
    %p103 = scmp.eq.s32.totalorder %s11, 0
    %p104 = por %p102, %p103
    %p105 = scmp.ne.s32.totalorder %s94, %s97
    %p106 = scmp.eq.s32.totalorder %s16, 1
    %p107 = por %p105, %p106
    %p108 = scmp.ne.s32.totalorder %s97, %s98
    %p109 = scmp.eq.s32.totalorder %s16, 0
    %p110 = por %p108, %p109
    %p111 = scmp.ne.s32.totalorder %s97, %s98
    %p112 = scmp.eq.s32.totalorder %s17, 1
    %p113 = por %p111, %p112
    %p115 = scmp.ne.s32.totalorder %s98, %s114
    %p116 = scmp.eq.s32.totalorder %s17, 0
    %p117 = por %p115, %p116
    %s118 = ssub.s32 %s11, %s18
    %p119 = scmp.eq.s32.totalorder %s118, 0
    %s121 = sadd.s32 %s120, 1
    %s122 = scalar_select %p119, %s120, %s121
    %p125 = pneg %p119
    %p126 = scmp.eq.s32.totalorder %s11, 1
    %p127 = por %p125, %p126
    %p128 = scmp.ne.s32.totalorder %s120, %s123
    %p129 = scmp.eq.s32.totalorder %s11, 0
    %p130 = por %p128, %p129
    %p131 = scmp.ne.s32.totalorder %s120, %s123
    %p132 = scmp.eq.s32.totalorder %s16, 1
    %p133 = por %p131, %p132
    %p134 = scmp.ne.s32.totalorder %s123, %s124
    %p135 = scmp.eq.s32.totalorder %s16, 0
    %p136 = por %p134, %p135
    %p137 = scmp.ne.s32.totalorder %s123, %s124
    %p138 = scmp.eq.s32.totalorder %s17, 1
    %p139 = por %p137, %p138
    %p141 = scmp.ne.s32.totalorder %s124, %s140
    %p142 = scmp.eq.s32.totalorder %s17, 0
    %p143 = por %p141, %p142
    %p144 = scmp.le.s32.totalorder 1, %s11
    %p145 = scmp.lt.s32.totalorder %s11, 3
    %p146 = pnand %p144, %p145
    %p147 = pneg %p146
    // Predicated region
    $region9: #{basic_block_forward.7} parent=5 // pred_check
      _
    $region10: #{basic_block_forward.7} parent=5 // pred_check_branch
      %149 = sbr.rel (%p146) target = $region12
    $region11: #{basic_block_forward.7} parent=5 // pred_region
      %s150 = ssub.s32 %s11, 1
      // Predicated region
      $region13: #{basic_block_forward.7} parent=11 // pred_check
        %p151 = pneg %p58
      $region14: #{basic_block_forward.7} parent=11 // pred_check_branch
        %153 = sbr.rel (%p151) target = $region16
      $region15: #{basic_block_forward.7} parent=11 // pred_region
        _
      $region16: #{basic_block_forward.7} parent=11 // pred_fallthru
        _
    $region12: #{basic_block_forward.7} parent=5 // pred_fallthru
      _
    %p154 = scmp.lt.s32.totalorder %s11, 2
    // Predicated region
    $region17: #{basic_block_forward.7} parent=5 // pred_check
      %p155 = pneg %p154
    $region18: #{basic_block_forward.7} parent=5 // pred_check_branch
      %157 = sbr.rel (%p155) target = $region20
    $region19: #{basic_block_forward.7} parent=5 // pred_region
      // Predicated region
      $region21: #{basic_block_forward.7} parent=19 // pred_check
        %p158 = pneg %p31
      $region22: #{basic_block_forward.7} parent=19 // pred_check_branch
        %160 = sbr.rel (%p158) target = $region24
      $region23: #{basic_block_forward.7} parent=19 // pred_region
        %s161 = smul.u32 32, %s11
        %p162 = scmp.lt.s32.totalorder %s161, 63
        %s163 = scalar_select %p162, %s161, 63
        %s164 = smul.addr %s163, 8
        %s165 = scalar_lea.vmem %s0, %s164
        %s166 = smul.u32 32, %s11
      $region24: #{basic_block_forward.7} parent=19 // pred_fallthru
        _
      // Predicated region
      $region25: #{basic_block_forward.7} parent=19 // pred_check
        %p167 = pneg %p78
      $region26: #{basic_block_forward.7} parent=19 // pred_check_branch
        %169 = sbr.rel (%p167) target = $region28
      $region27: #{basic_block_forward.7} parent=19 // pred_region
        %s170 = smul.u32 32, %s11
        %p171 = scmp.lt.s32.totalorder %s170, 63
        %s172 = scalar_select %p171, %s170, 63
        %s173 = smul.addr %s172, 8
        %s174 = scalar_lea.vmem %s2, %s173
        %s175 = smul.u32 32, %s11
      $region28: #{basic_block_forward.7} parent=19 // pred_fallthru
        _
    $region20: #{basic_block_forward.7} parent=5 // pred_fallthru
      _
    %p176 = scmp.le.s32.totalorder 1, %s11
    %p177 = scmp.lt.s32.totalorder %s11, 3
    %p178 = pnand %p176, %p177
    %p179 = pneg %p178
    // Predicated region
    $region29: #{basic_block_forward.7} parent=5 // pred_check
      _
    $region30: #{basic_block_forward.7} parent=5 // pred_check_branch
      %181 = sbr.rel (%p178) target = $region32
    $region31: #{basic_block_forward.7} parent=5 // pred_region
      %s182 = ssub.s32 %s11, 1
      %s183 = smul.u32 32, %s16
      %p184 = scmp.lt.s32.totalorder %s183, 63
      %s185 = scalar_select %p184, %s183, 63
      %s186 = smul.addr %s185, 8
      %s187 = scalar_lea.vmem %s0, %s186
      %p188 = pneg %p37
      %p189 = pneg %p34
      %p190 = pneg %p58
      %p191 = pneg %p55
      %s192 = smul.u32 32, %s16
      %p193 = scmp.lt.s32.totalorder %s192, 63
      %s194 = scalar_select %p193, %s192, 63
      %s195 = smul.addr %s194, 8
      %s196 = scalar_lea.vmem %s2, %s195
      %p197 = pneg %p84
      %p198 = pneg %p81
      %p199 = pneg %p110
      %p200 = pneg %p107
      %s201 = smul.u32 32, %s16
      %p202 = scmp.lt.s32.totalorder %s201, 63
      %s203 = scalar_select %p202, %s201, 63
      %s204 = smul.addr %s203, 8
      %s205 = scalar_lea.vmem %s3, %s204
      %p206 = pneg %p136
      %p207 = pneg %p133
      %s208 = smul.u32 32, %s16
      %p209 = scmp.lt.s32.totalorder %s208, 63
      %s210 = scalar_select %p209, %s208, 63
      %s211 = smul.addr %s210, 8
      %s212 = scalar_lea.vmem %s4, %s211
      %s213 = smul.u32 32, %s16
      %p214 = scmp.lt.s32.totalorder %s213, 63
      %s215 = scalar_select %p214, %s213, 63
      %s216 = smul.addr %s215, 8
      %s217 = scalar_lea.vmem %s0, %s216
      %s218 = smul.u32 32, %s16
      %s219 = smul.u32 32, %s16
      %p220 = scmp.lt.s32.totalorder %s219, 63
      %s221 = scalar_select %p220, %s219, 63
      %s222 = smul.addr %s221, 8
      %s223 = scalar_lea.vmem %s2, %s222
      %s224 = smul.u32 32, %s16
      %s225 = smul.u32 32, %s16
      %p226 = scmp.lt.s32.totalorder %s225, 63
      %s227 = scalar_select %p226, %s225, 63
      %s228 = smul.addr %s227, 8
      %s229 = scalar_lea.vmem %s3, %s228
      %s230 = smul.u32 32, %s16
      %s231 = smul.u32 32, %s16
      %p232 = scmp.lt.s32.totalorder %s231, 63
      %s233 = scalar_select %p232, %s231, 63
      %s234 = smul.addr %s233, 8
      %s235 = scalar_lea.vmem %s4, %s234
      %s236 = smul.u32 32, %s16
      %v237 = vld [vmem:[%s217] sm:$0xff]
      %v238 = vld [vmem:[%s217 + $0x8] sm:$0xff]
      %v239 = vld [vmem:[%s217 + $0x10] sm:$0xff]
      %v240 = vld [vmem:[%s217 + $0x18] sm:$0xff]
      %v241 = vld [vmem:[%s217 + $0x20] sm:$0xff]
      %v242 = vld [vmem:[%s217 + $0x28] sm:$0xff]
      %v243 = vld [vmem:[%s217 + $0x30] sm:$0xff]
      %v244 = vld [vmem:[%s217 + $0x38] sm:$0xff]
      %v245 = vld [vmem:[%s217 + $0x40] sm:$0xff]
      %v246 = vld [vmem:[%s217 + $0x48] sm:$0xff]
      %v247 = vld [vmem:[%s217 + $0x50] sm:$0xff]
      %v248 = vld [vmem:[%s217 + $0x58] sm:$0xff]
      %v249 = vld [vmem:[%s217 + $0x60] sm:$0xff]
      %v250 = vld [vmem:[%s217 + $0x68] sm:$0xff]
      %v251 = vld [vmem:[%s217 + $0x70] sm:$0xff]
      %v252 = vld [vmem:[%s217 + $0x78] sm:$0xff]
      %v253 = vld [vmem:[%s217 + $0x80] sm:$0xff]
      %v254 = vld [vmem:[%s217 + $0x88] sm:$0xff]
      %v255 = vld [vmem:[%s217 + $0x90] sm:$0xff]
      %v256 = vld [vmem:[%s217 + $0x98] sm:$0xff]
      %v257 = vld [vmem:[%s217 + $0xa0] sm:$0xff]
      %v258 = vld [vmem:[%s217 + $0xa8] sm:$0xff]
      %v259 = vld [vmem:[%s217 + $0xb0] sm:$0xff]
      %v260 = vld [vmem:[%s217 + $0xb8] sm:$0xff]
      %v261 = vld [vmem:[%s217 + $0xc0] sm:$0xff]
      %v262 = vld [vmem:[%s217 + $0xc8] sm:$0xff]
      %v263 = vld [vmem:[%s217 + $0xd0] sm:$0xff]
      %v264 = vld [vmem:[%s217 + $0xd8] sm:$0xff]
      %v265 = vld [vmem:[%s217 + $0xe0] sm:$0xff]
      %v266 = vld [vmem:[%s217 + $0xe8] sm:$0xff]
      %v267 = vld [vmem:[%s217 + $0xf0] sm:$0xff]
      %v268 = vld [vmem:[%s217 + $0xf8] sm:$0xff]
      %v269 = vld [vmem:[%s1] sm:$0x1]
      %v270 = vld [vmem:[%s1 + $0x1] sm:$0x1]
      %v271 = vld [vmem:[%s1 + $0x2] sm:$0x1]
      %v272 = vld [vmem:[%s1 + $0x3] sm:$0x1]
      %v273 = vlaneseq
      %v274 = vshrl.u32 %v273, 7
      %v275 = vsub.s32 0, %v274
      %v276 = vrot.slane %v269, %v275
      %v277 = vsub.f32 %v237, %v276
      %v278 = vsub.f32 %v238, %v276
      %v279 = vsub.f32 %v239, %v276
      %v280 = vsub.f32 %v240, %v276
      %v281 = vsub.f32 %v241, %v276
      %v282 = vsub.f32 %v242, %v276
      %v283 = vsub.f32 %v243, %v276
      %v284 = vsub.f32 %v244, %v276
      %v285 = vsub.f32 %v245, %v276
      %v286 = vsub.f32 %v246, %v276
      %v287 = vsub.f32 %v247, %v276
      %v288 = vsub.f32 %v248, %v276
      %v289 = vsub.f32 %v249, %v276
      %v290 = vsub.f32 %v250, %v276
      %v291 = vsub.f32 %v251, %v276
      %v292 = vsub.f32 %v252, %v276
      %v293 = vsub.f32 %v253, %v276
      %v294 = vsub.f32 %v254, %v276
      %v295 = vsub.f32 %v255, %v276
      %v296 = vsub.f32 %v256, %v276
      %v297 = vsub.f32 %v257, %v276
      %v298 = vsub.f32 %v258, %v276
      %v299 = vsub.f32 %v259, %v276
      %v300 = vsub.f32 %v260, %v276
      %v301 = vsub.f32 %v261, %v276
      %v302 = vsub.f32 %v262, %v276
      %v303 = vsub.f32 %v263, %v276
      %v304 = vsub.f32 %v264, %v276
      %v305 = vsub.f32 %v265, %v276
      %v306 = vsub.f32 %v266, %v276
      %v307 = vsub.f32 %v267, %v276
      %v308 = vsub.f32 %v268, %v276
      %v309 = vlaneseq
      %v310 = vshrl.u32 %v309, 7
      %v311 = vsub.s32 0, %v310
      %v312 = vrot.slane %v270, %v311
      %v313 = vmul.f32 %v277, %v312
      %v314 = vmul.f32 %v278, %v312
      %v315 = vmul.f32 %v279, %v312
      %v316 = vmul.f32 %v280, %v312
      %v317 = vmul.f32 %v281, %v312
      %v318 = vmul.f32 %v282, %v312
      %v319 = vmul.f32 %v283, %v312
      %v320 = vmul.f32 %v284, %v312
      %v321 = vmul.f32 %v285, %v312
      %v322 = vmul.f32 %v286, %v312
      %v323 = vmul.f32 %v287, %v312
      %v324 = vmul.f32 %v288, %v312
      %v325 = vmul.f32 %v289, %v312
      %v326 = vmul.f32 %v290, %v312
      %v327 = vmul.f32 %v291, %v312
      %v328 = vmul.f32 %v292, %v312
      %v329 = vmul.f32 %v293, %v312
      %v330 = vmul.f32 %v294, %v312
      %v331 = vmul.f32 %v295, %v312
      %v332 = vmul.f32 %v296, %v312
      %v333 = vmul.f32 %v297, %v312
      %v334 = vmul.f32 %v298, %v312
      %v335 = vmul.f32 %v299, %v312
      %v336 = vmul.f32 %v300, %v312
      %v337 = vmul.f32 %v301, %v312
      %v338 = vmul.f32 %v302, %v312
      %v339 = vmul.f32 %v303, %v312
      %v340 = vmul.f32 %v304, %v312
      %v341 = vmul.f32 %v305, %v312
      %v342 = vmul.f32 %v306, %v312
      %v343 = vmul.f32 %v307, %v312
      %v344 = vmul.f32 %v308, %v312
      %345 = vst [vmem:[%s235] sm:$0xff] %v313
      %346 = vst [vmem:[%s235 + $0x8] sm:$0xff] %v314
      %347 = vst [vmem:[%s235 + $0x10] sm:$0xff] %v315
      %348 = vst [vmem:[%s235 + $0x18] sm:$0xff] %v316
      %349 = vst [vmem:[%s235 + $0x20] sm:$0xff] %v317
      %350 = vst [vmem:[%s235 + $0x28] sm:$0xff] %v318
      %351 = vst [vmem:[%s235 + $0x30] sm:$0xff] %v319
      %352 = vst [vmem:[%s235 + $0x38] sm:$0xff] %v320
      %353 = vst [vmem:[%s235 + $0x40] sm:$0xff] %v321
      %354 = vst [vmem:[%s235 + $0x48] sm:$0xff] %v322
      %355 = vst [vmem:[%s235 + $0x50] sm:$0xff] %v323
      %356 = vst [vmem:[%s235 + $0x58] sm:$0xff] %v324
      %357 = vst [vmem:[%s235 + $0x60] sm:$0xff] %v325
      %358 = vst [vmem:[%s235 + $0x68] sm:$0xff] %v326
      %359 = vst [vmem:[%s235 + $0x70] sm:$0xff] %v327
      %360 = vst [vmem:[%s235 + $0x78] sm:$0xff] %v328
      %361 = vst [vmem:[%s235 + $0x80] sm:$0xff] %v329
      %362 = vst [vmem:[%s235 + $0x88] sm:$0xff] %v330
      %363 = vst [vmem:[%s235 + $0x90] sm:$0xff] %v331
      %364 = vst [vmem:[%s235 + $0x98] sm:$0xff] %v332
      %365 = vst [vmem:[%s235 + $0xa0] sm:$0xff] %v333
      %366 = vst [vmem:[%s235 + $0xa8] sm:$0xff] %v334
      %367 = vst [vmem:[%s235 + $0xb0] sm:$0xff] %v335
      %368 = vst [vmem:[%s235 + $0xb8] sm:$0xff] %v336
      %369 = vst [vmem:[%s235 + $0xc0] sm:$0xff] %v337
      %370 = vst [vmem:[%s235 + $0xc8] sm:$0xff] %v338
      %371 = vst [vmem:[%s235 + $0xd0] sm:$0xff] %v339
      %372 = vst [vmem:[%s235 + $0xd8] sm:$0xff] %v340
      %373 = vst [vmem:[%s235 + $0xe0] sm:$0xff] %v341
      %374 = vst [vmem:[%s235 + $0xe8] sm:$0xff] %v342
      %375 = vst [vmem:[%s235 + $0xf0] sm:$0xff] %v343
      %376 = vst [vmem:[%s235 + $0xf8] sm:$0xff] %v344
      %v377 = vlaneseq
      %v378 = vshrl.u32 %v377, 7
      %v379 = vsub.s32 0, %v378
      %v380 = vrot.slane %v271, %v379
      %v381 = vmul.f32 %v380, %v313
      %v382 = vmul.f32 %v380, %v314
      %v383 = vmul.f32 %v380, %v315
      %v384 = vmul.f32 %v380, %v316
      %v385 = vmul.f32 %v380, %v317
      %v386 = vmul.f32 %v380, %v318
      %v387 = vmul.f32 %v380, %v319
      %v388 = vmul.f32 %v380, %v320
      %v389 = vmul.f32 %v380, %v321
      %v390 = vmul.f32 %v380, %v322
      %v391 = vmul.f32 %v380, %v323
      %v392 = vmul.f32 %v380, %v324
      %v393 = vmul.f32 %v380, %v325
      %v394 = vmul.f32 %v380, %v326
      %v395 = vmul.f32 %v380, %v327
      %v396 = vmul.f32 %v380, %v328
      %v397 = vmul.f32 %v380, %v329
      %v398 = vmul.f32 %v380, %v330
      %v399 = vmul.f32 %v380, %v331
      %v400 = vmul.f32 %v380, %v332
      %v401 = vmul.f32 %v380, %v333
      %v402 = vmul.f32 %v380, %v334
      %v403 = vmul.f32 %v380, %v335
      %v404 = vmul.f32 %v380, %v336
      %v405 = vmul.f32 %v380, %v337
      %v406 = vmul.f32 %v380, %v338
      %v407 = vmul.f32 %v380, %v339
      %v408 = vmul.f32 %v380, %v340
      %v409 = vmul.f32 %v380, %v341
      %v410 = vmul.f32 %v380, %v342
      %v411 = vmul.f32 %v380, %v343
      %v412 = vmul.f32 %v380, %v344
      %v413 = vlaneseq
      %v414 = vshrl.u32 %v413, 7
      %v415 = vsub.s32 0, %v414
      %v416 = vrot.slane %v272, %v415
      %v417 = vadd.f32 %v381, %v416
      %v418 = vadd.f32 %v382, %v416
      %v419 = vadd.f32 %v383, %v416
      %v420 = vadd.f32 %v384, %v416
      %v421 = vadd.f32 %v385, %v416
      %v422 = vadd.f32 %v386, %v416
      %v423 = vadd.f32 %v387, %v416
      %v424 = vadd.f32 %v388, %v416
      %v425 = vadd.f32 %v389, %v416
      %v426 = vadd.f32 %v390, %v416
      %v427 = vadd.f32 %v391, %v416
      %v428 = vadd.f32 %v392, %v416
      %v429 = vadd.f32 %v393, %v416
      %v430 = vadd.f32 %v394, %v416
      %v431 = vadd.f32 %v395, %v416
      %v432 = vadd.f32 %v396, %v416
      %v433 = vadd.f32 %v397, %v416
      %v434 = vadd.f32 %v398, %v416
      %v435 = vadd.f32 %v399, %v416
      %v436 = vadd.f32 %v400, %v416
      %v437 = vadd.f32 %v401, %v416
      %v438 = vadd.f32 %v402, %v416
      %v439 = vadd.f32 %v403, %v416
      %v440 = vadd.f32 %v404, %v416
      %v441 = vadd.f32 %v405, %v416
      %v442 = vadd.f32 %v406, %v416
      %v443 = vadd.f32 %v407, %v416
      %v444 = vadd.f32 %v408, %v416
      %v445 = vadd.f32 %v409, %v416
      %v446 = vadd.f32 %v410, %v416
      %v447 = vadd.f32 %v411, %v416
      %v448 = vadd.f32 %v412, %v416
      %v449 = vld [vmem:[%s223] sm:$0xff]
      %v450 = vld [vmem:[%s223 + $0x8] sm:$0xff]
      %v451 = vld [vmem:[%s223 + $0x10] sm:$0xff]
      %v452 = vld [vmem:[%s223 + $0x18] sm:$0xff]
      %v453 = vld [vmem:[%s223 + $0x20] sm:$0xff]
      %v454 = vld [vmem:[%s223 + $0x28] sm:$0xff]
      %v455 = vld [vmem:[%s223 + $0x30] sm:$0xff]
      %v456 = vld [vmem:[%s223 + $0x38] sm:$0xff]
      %v457 = vld [vmem:[%s223 + $0x40] sm:$0xff]
      %v458 = vld [vmem:[%s223 + $0x48] sm:$0xff]
      %v459 = vld [vmem:[%s223 + $0x50] sm:$0xff]
      %v460 = vld [vmem:[%s223 + $0x58] sm:$0xff]
      %v461 = vld [vmem:[%s223 + $0x60] sm:$0xff]
      %v462 = vld [vmem:[%s223 + $0x68] sm:$0xff]
      %v463 = vld [vmem:[%s223 + $0x70] sm:$0xff]
      %v464 = vld [vmem:[%s223 + $0x78] sm:$0xff]
      %v465 = vld [vmem:[%s223 + $0x80] sm:$0xff]
      %v466 = vld [vmem:[%s223 + $0x88] sm:$0xff]
      %v467 = vld [vmem:[%s223 + $0x90] sm:$0xff]
      %v468 = vld [vmem:[%s223 + $0x98] sm:$0xff]
      %v469 = vld [vmem:[%s223 + $0xa0] sm:$0xff]
      %v470 = vld [vmem:[%s223 + $0xa8] sm:$0xff]
      %v471 = vld [vmem:[%s223 + $0xb0] sm:$0xff]
      %v472 = vld [vmem:[%s223 + $0xb8] sm:$0xff]
      %v473 = vld [vmem:[%s223 + $0xc0] sm:$0xff]
      %v474 = vld [vmem:[%s223 + $0xc8] sm:$0xff]
      %v475 = vld [vmem:[%s223 + $0xd0] sm:$0xff]
      %v476 = vld [vmem:[%s223 + $0xd8] sm:$0xff]
      %v477 = vld [vmem:[%s223 + $0xe0] sm:$0xff]
      %v478 = vld [vmem:[%s223 + $0xe8] sm:$0xff]
      %v479 = vld [vmem:[%s223 + $0xf0] sm:$0xff]
      %v480 = vld [vmem:[%s223 + $0xf8] sm:$0xff]
      %v481 = vadd.f32 %v417, %v449
      %v482 = vadd.f32 %v418, %v450
      %v483 = vadd.f32 %v419, %v451
      %v484 = vadd.f32 %v420, %v452
      %v485 = vadd.f32 %v421, %v453
      %v486 = vadd.f32 %v422, %v454
      %v487 = vadd.f32 %v423, %v455
      %v488 = vadd.f32 %v424, %v456
      %v489 = vadd.f32 %v425, %v457
      %v490 = vadd.f32 %v426, %v458
      %v491 = vadd.f32 %v427, %v459
      %v492 = vadd.f32 %v428, %v460
      %v493 = vadd.f32 %v429, %v461
      %v494 = vadd.f32 %v430, %v462
      %v495 = vadd.f32 %v431, %v463
      %v496 = vadd.f32 %v432, %v464
      %v497 = vadd.f32 %v433, %v465
      %v498 = vadd.f32 %v434, %v466
      %v499 = vadd.f32 %v435, %v467
      %v500 = vadd.f32 %v436, %v468
      %v501 = vadd.f32 %v437, %v469
      %v502 = vadd.f32 %v438, %v470
      %v503 = vadd.f32 %v439, %v471
      %v504 = vadd.f32 %v440, %v472
      %v505 = vadd.f32 %v441, %v473
      %v506 = vadd.f32 %v442, %v474
      %v507 = vadd.f32 %v443, %v475
      %v508 = vadd.f32 %v444, %v476
      %v509 = vadd.f32 %v445, %v477
      %v510 = vadd.f32 %v446, %v478
      %v511 = vadd.f32 %v447, %v479
      %v512 = vadd.f32 %v448, %v480
      %v513 = vmax.f32 %v481, 0.0
      %v514 = vmax.f32 %v482, 0.0
      %v515 = vmax.f32 %v483, 0.0
      %v516 = vmax.f32 %v484, 0.0
      %v517 = vmax.f32 %v485, 0.0
      %v518 = vmax.f32 %v486, 0.0
      %v519 = vmax.f32 %v487, 0.0
      %v520 = vmax.f32 %v488, 0.0
      %v521 = vmax.f32 %v489, 0.0
      %v522 = vmax.f32 %v490, 0.0
      %v523 = vmax.f32 %v491, 0.0
      %v524 = vmax.f32 %v492, 0.0
      %v525 = vmax.f32 %v493, 0.0
      %v526 = vmax.f32 %v494, 0.0
      %v527 = vmax.f32 %v495, 0.0
      %v528 = vmax.f32 %v496, 0.0
      %v529 = vmax.f32 %v497, 0.0
      %v530 = vmax.f32 %v498, 0.0
      %v531 = vmax.f32 %v499, 0.0
      %v532 = vmax.f32 %v500, 0.0
      %v533 = vmax.f32 %v501, 0.0
      %v534 = vmax.f32 %v502, 0.0
      %v535 = vmax.f32 %v503, 0.0
      %v536 = vmax.f32 %v504, 0.0
      %v537 = vmax.f32 %v505, 0.0
      %v538 = vmax.f32 %v506, 0.0
      %v539 = vmax.f32 %v507, 0.0
      %v540 = vmax.f32 %v508, 0.0
      %v541 = vmax.f32 %v509, 0.0
      %v542 = vmax.f32 %v510, 0.0
      %v543 = vmax.f32 %v511, 0.0
      %v544 = vmax.f32 %v512, 0.0
      %545 = vst [vmem:[%s229] sm:$0xff] %v513
      %546 = vst [vmem:[%s229 + $0x8] sm:$0xff] %v514
      %547 = vst [vmem:[%s229 + $0x10] sm:$0xff] %v515
      %548 = vst [vmem:[%s229 + $0x18] sm:$0xff] %v516
      %549 = vst [vmem:[%s229 + $0x20] sm:$0xff] %v517
      %550 = vst [vmem:[%s229 + $0x28] sm:$0xff] %v518
      %551 = vst [vmem:[%s229 + $0x30] sm:$0xff] %v519
      %552 = vst [vmem:[%s229 + $0x38] sm:$0xff] %v520
      %553 = vst [vmem:[%s229 + $0x40] sm:$0xff] %v521
      %554 = vst [vmem:[%s229 + $0x48] sm:$0xff] %v522
      %555 = vst [vmem:[%s229 + $0x50] sm:$0xff] %v523
      %556 = vst [vmem:[%s229 + $0x58] sm:$0xff] %v524
      %557 = vst [vmem:[%s229 + $0x60] sm:$0xff] %v525
      %558 = vst [vmem:[%s229 + $0x68] sm:$0xff] %v526
      %559 = vst [vmem:[%s229 + $0x70] sm:$0xff] %v527
      %560 = vst [vmem:[%s229 + $0x78] sm:$0xff] %v528
      %561 = vst [vmem:[%s229 + $0x80] sm:$0xff] %v529
      %562 = vst [vmem:[%s229 + $0x88] sm:$0xff] %v530
      %563 = vst [vmem:[%s229 + $0x90] sm:$0xff] %v531
      %564 = vst [vmem:[%s229 + $0x98] sm:$0xff] %v532
      %565 = vst [vmem:[%s229 + $0xa0] sm:$0xff] %v533
      %566 = vst [vmem:[%s229 + $0xa8] sm:$0xff] %v534
      %567 = vst [vmem:[%s229 + $0xb0] sm:$0xff] %v535
      %568 = vst [vmem:[%s229 + $0xb8] sm:$0xff] %v536
      %569 = vst [vmem:[%s229 + $0xc0] sm:$0xff] %v537
      %570 = vst [vmem:[%s229 + $0xc8] sm:$0xff] %v538
      %571 = vst [vmem:[%s229 + $0xd0] sm:$0xff] %v539
      %572 = vst [vmem:[%s229 + $0xd8] sm:$0xff] %v540
      %573 = vst [vmem:[%s229 + $0xe0] sm:$0xff] %v541
      %574 = vst [vmem:[%s229 + $0xe8] sm:$0xff] %v542
      %575 = vst [vmem:[%s229 + $0xf0] sm:$0xff] %v543
      %576 = vst [vmem:[%s229 + $0xf8] sm:$0xff] %v544
      %s577 = smul.u32 32, %s16
      %p578 = scmp.lt.s32.totalorder %s577, 63
      %s579 = scalar_select %p578, %s577, 63
      %s580 = smul.addr %s579, 8
      %s581 = scalar_lea.vmem %s3, %s580
      %s582 = smul.u32 32, %s16
      %p583 = scmp.lt.s32.totalorder %s582, 63
      %s584 = scalar_select %p583, %s582, 63
      %s585 = smul.addr %s584, 8
      %s586 = scalar_lea.vmem %s4, %s585
      // Predicated region
      $region33: #{basic_block_forward.7} parent=31 // pred_check
        %p587 = pneg %p107
      $region34: #{basic_block_forward.7} parent=31 // pred_check_branch
        %589 = sbr.rel (%p587) target = $region36
      $region35: #{basic_block_forward.7} parent=31 // pred_region
        %s590 = smul.u32 32, %s16
      $region36: #{basic_block_forward.7} parent=31 // pred_fallthru
        _
      // Predicated region
      $region37: #{basic_block_forward.7} parent=31 // pred_check
        %p591 = pneg %p133
      $region38: #{basic_block_forward.7} parent=31 // pred_check_branch
        %593 = sbr.rel (%p591) target = $region40
      $region39: #{basic_block_forward.7} parent=31 // pred_region
        %s594 = smul.u32 32, %s16
      $region40: #{basic_block_forward.7} parent=31 // pred_fallthru
        _
    $region32: #{basic_block_forward.7} parent=5 // pred_fallthru
      _
    %p595 = scmp.le.s32.totalorder 2, %s11
    // Predicated region
    $region41: #{basic_block_forward.7} parent=5 // pred_check
      %p596 = pneg %p595
    $region42: #{basic_block_forward.7} parent=5 // pred_check_branch
      %598 = sbr.rel (%p596) target = $region44
    $region43: #{basic_block_forward.7} parent=5 // pred_region
      %s599 = ssub.s32 %s11, 2
      // Predicated region
      $region45: #{basic_block_forward.7} parent=43 // pred_check
        %p600 = pneg %p113
      $region46: #{basic_block_forward.7} parent=43 // pred_check_branch
        %602 = sbr.rel (%p600) target = $region48
      $region47: #{basic_block_forward.7} parent=43 // pred_region
        %s603 = smul.u32 32, %s17
        %p604 = scmp.lt.s32.totalorder %s603, 63
        %s605 = scalar_select %p604, %s603, 63
        %s606 = smul.addr %s605, 8
        %s607 = scalar_lea.vmem %s3, %s606
      $region48: #{basic_block_forward.7} parent=43 // pred_fallthru
        _
      // Predicated region
      $region49: #{basic_block_forward.7} parent=43 // pred_check
        %p608 = pneg %p139
      $region50: #{basic_block_forward.7} parent=43 // pred_check_branch
        %610 = sbr.rel (%p608) target = $region52
      $region51: #{basic_block_forward.7} parent=43 // pred_region
        %s611 = smul.u32 32, %s17
        %p612 = scmp.lt.s32.totalorder %s611, 63
        %s613 = scalar_select %p612, %s611, 63
        %s614 = smul.addr %s613, 8
        %s615 = scalar_lea.vmem %s4, %s614
      $region52: #{basic_block_forward.7} parent=43 // pred_fallthru
        _
    $region44: #{basic_block_forward.7} parent=5 // pred_fallthru
      _
  $region6: #{basic_block_forward.7} parent=0 // loop_footer
    %s15 = sadd.s32 1, %s11
  $region7: #{basic_block_forward.7} parent=0 // loop_footer_branch
    %10 = sbr.rel target = $region3
  $region8: #{basic_block_forward.7} parent=0 // loop_exit
    _

</llo_original>
